<compile_context>
chip_gen: v6e
topology: v6e:2x2x1
jax: 0.10.0
libtpu: 0.0.40
codegen_flags: <defaults>
</compile_context>

<pallas_src>
import jax
import jax.numpy as jnp
from jax.experimental import pallas as pl
from jax.experimental.pallas import tpu as pltpu  # noqa: F401  (kept for scale-up knobs above)


# ----------------------------------------------------------------------------
# Fused kernel: all LSTM layers + FC head in one invocation (gridless)
# ----------------------------------------------------------------------------
def _fused_lstm_fc_kernel(x_ref, *refs):
    """Fused multi-layer LSTM + FC.

    x_ref: (B, T, I) batch-first input (full block in VMEM).

    refs = (w_ih_0, w_hh_0, b_0, ..., w_ih_{L-1}, w_hh_{L-1}, b_{L-1},
            fc_w, fc_b, o_ref)
      w_ih_l: (in_l, 4H) bf16, pre-transposed, gate cols permuted to [i,f,o,g]
      w_hh_l: (H, 4H)    bf16, pre-transposed, gate cols permuted to [i,f,o,g]
      b_l:    (1, 4H)    f32,  pre-summed b_ih + b_hh, same column permute
      fc_w:   (H, O)     bf16, pre-transposed Linear weight
      fc_b:   (1, O)     f32,  Linear bias
      o_ref:  (B, O)     output
    """
    o_ref = refs[-1]
    fc_w_ref = refs[-3]
    fc_b_ref = refs[-2]
    layer_refs = refs[:-3]
    L = len(layer_refs) // 3

    B, T, I = x_ref.shape
    H = layer_refs[1].shape[0]  # w_hh_0: (H, 4H)
    G = 4 * H
    H3 = 3 * H
    f32 = jnp.float32
    bf16 = jnp.bfloat16

    def cell(gates, c_prev):
        # Gate columns are pre-permuted to [i, f, o, g]: one sigmoid pass over
        # the first 3H lanes, one tanh pass over the last H lanes (half the
        # EUP work of two full-width (B, 4H) passes).
        sg = jax.nn.sigmoid(gates[:, :H3])
        g = jnp.tanh(gates[:, H3:])
        i = sg[:, 0 * H:1 * H]
        f = sg[:, 1 * H:2 * H]
        o = sg[:, 2 * H:3 * H]
        c_new = f * c_prev + i * g
        h_new = o * jnp.tanh(c_new)
        return h_new, c_new

    # Load weights once.
    w_ih = [layer_refs[3 * l + 0][...] for l in range(L)]
    w_hh = [layer_refs[3 * l + 1][...] for l in range(L)]
    bias = [layer_refs[3 * l + 2][...] for l in range(L)]

    # ---- Layer-0 input projection, batched over all timesteps --------------
    # (B*T, I) @ (I, 4H): one MXU push + one bias broadcast for the whole
    # sequence.  Both reshapes keep the last (lane) dim and merge/split the
    # sublane dim on 8-row tile boundaries, so they are layout no-ops.
    x2d = x_ref[...].reshape(B * T, I).astype(bf16)
    gins0 = (jnp.dot(x2d, w_ih[0], preferred_element_type=f32)
             .reshape(B, T, G) + bias[0])

    # ---- Wavefront (diagonal) schedule over (layer, time) ------------------
    h = [jnp.zeros((B, H), bf16) for _ in range(L)]   # matmul-side hidden (bf16)
    c = [jnp.zeros((B, H), f32) for _ in range(L)]    # cell state kept in f32
    ys = [[None] * T for _ in range(L)]               # per-layer hidden seq (bf16)

    for wv in range(T + L - 1):
        for l in range(L):
            t = wv - l
            if not (0 <= t < T):
                continue
            if l == 0:
                gin = gins0[:, t, :]
            else:
                gin = jnp.dot(ys[l - 1][t], w_ih[l],
                              preferred_element_type=f32) + bias[l]
            gates = gin + jnp.dot(h[l], w_hh[l], preferred_element_type=f32)
            h_f32, c[l] = cell(gates, c[l])
            h[l] = h_f32.astype(bf16)
            ys[l][t] = h[l]

    # ---- Final Linear on the last timestep of the top layer ----------------
    out = (jnp.dot(ys[L - 1][T - 1], fc_w_ref[...],
                   preferred_element_type=f32) + fc_b_ref[...])
    o_ref[...] = out.astype(o_ref.dtype)


# ----------------------------------------------------------------------------
# Wrapper (no input transpose: kernel consumes batch-first x directly)
# ----------------------------------------------------------------------------
def lstm_fc_forward(params, x_bti):
    """Fused Pallas forward. x_bti: (B, T, input_size) -> (B, output_size)."""
    B = x_bti.shape[0]
    O = params["fc_w_t"].shape[1]

    args = [x_bti]
    for (w_ih_t, w_hh_t, b) in params["layers"]:
        args.extend((w_ih_t, w_hh_t, b))
    args.extend((params["fc_w_t"], params["fc_b"]))

    return pl.pallas_call(
        _fused_lstm_fc_kernel,
        out_shape=jax.ShapeDtypeStruct((B, O), x_bti.dtype),
    )(*args)


lstm_forward = jax.jit(lstm_fc_forward)


# ----------------------------------------------------------------------------
# Parameter init (PyTorch-style), stored in kernel layout
# ----------------------------------------------------------------------------
def _permute_gate_cols(w):
    """Permute the 4H gate axis from PyTorch [i,f,g,o] to kernel [i,f,o,g]."""
    H = w.shape[-1] // 4
    return jnp.concatenate(
        [w[..., :2 * H], w[..., 3 * H:], w[..., 2 * H:3 * H]], axis=-1)


def init_lstm_params(key, input_size, hidden_size, output_size, num_layers):
    """U(-1/sqrt(H), 1/sqrt(H)) init like nn.LSTM / nn.Linear.

    Stored directly in kernel layout: w_ih.T (in, 4H) bf16, w_hh.T (H, 4H)
    bf16, b_ih + b_hh (1, 4H) f32, all with gate columns permuted to
    [i, f, o, g]; fc_w.T (H, O) bf16, fc_b (1, O) f32.  One-time cost at init
    instead of per-forward transposes / adds / permutes.
    """
    H = hidden_size
    bound = 1.0 / (H ** 0.5)
    layers = []
    for l in range(num_layers):
        in_l = input_size if l == 0 else H
        key, k1, k2, k3, k4 = jax.random.split(key, 5)
        w_ih = jax.random.uniform(k1, (4 * H, in_l), jnp.float32, -bound, bound)
        w_hh = jax.random.uniform(k2, (4 * H, H), jnp.float32, -bound, bound)
        b_ih = jax.random.uniform(k3, (4 * H,), jnp.float32, -bound, bound)
        b_hh = jax.random.uniform(k4, (4 * H,), jnp.float32, -bound, bound)
        w_ih_t = _permute_gate_cols(jnp.transpose(w_ih)).astype(jnp.bfloat16)
        w_hh_t = _permute_gate_cols(jnp.transpose(w_hh)).astype(jnp.bfloat16)
        b = _permute_gate_cols((b_ih + b_hh)[None, :])  # stays f32
        layers.append((w_ih_t, w_hh_t, b))
    key, k5, k6 = jax.random.split(key, 3)
    fc_w = jax.random.uniform(k5, (output_size, H), jnp.float32, -bound, bound)
    fc_b = jax.random.uniform(k6, (output_size,), jnp.float32, -bound, bound)
    return {
        "layers": layers,
        "fc_w_t": jnp.transpose(fc_w).astype(jnp.bfloat16),
        "fc_b": fc_b[None, :],
    }


# ----------------------------------------------------------------------------
# Pure-JAX reference (lax.scan) matching PyTorch LSTM semantics, mirroring the
# kernel's bf16-MXU / f32-cell-math dtype strategy.
# ----------------------------------------------------------------------------
def lstm_forward_ref(params, x_bti):
    bf16 = jnp.bfloat16
    f32 = jnp.float32
    x = jnp.transpose(x_bti, (1, 0, 2))  # (T, B, I)
    B = x.shape[1]
    for (w_ih_t, w_hh_t, b) in params["layers"]:
        H = w_hh_t.shape[0]

        def step(carry, x_t, w_ih_t=w_ih_t, w_hh_t=w_hh_t, b=b, H=H):
            h, c = carry
            gates = (jnp.dot(x_t.astype(bf16), w_ih_t, preferred_element_type=f32)
                     + jnp.dot(h.astype(bf16), w_hh_t, preferred_element_type=f32)
                     + b)
            # Gate columns were permuted to [i, f, o, g] at init.
            i = jax.nn.sigmoid(gates[:, 0 * H:1 * H])
            f = jax.nn.sigmoid(gates[:, 1 * H:2 * H])
            o = jax.nn.sigmoid(gates[:, 2 * H:3 * H])
            g = jnp.tanh(gates[:, 3 * H:4 * H])
            c = f * c + i * g
            h = o * jnp.tanh(c)
            return (h, c), h

        init = (jnp.zeros((B, H), f32), jnp.zeros((B, H), f32))
        _, x = jax.lax.scan(step, init, x)
    return (jnp.dot(x[-1].astype(bf16), params["fc_w_t"],
                    preferred_element_type=f32) + params["fc_b"])


# ----------------------------------------------------------------------------
if __name__ == "__main__":
    # Small shapes consistent with the module's forward: x is (B, T, input_size).
    B, T = 2, 8
    input_size, hidden_size, output_size, num_layers = 4, 32, 8, 2
    dropout = 0.2  # inter-layer dropout is a no-op in this inference forward

    key = jax.random.PRNGKey(0)
    k_param, k_x = jax.random.split(key)
    params = init_lstm_params(k_param, input_size, hidden_size, output_size,
                              num_layers)
    x = jax.random.normal(k_x, (B, T, input_size), jnp.float32)

    out = jax.block_until_ready(lstm_forward(params, x))
    ref = lstm_forward_ref(params, x)

    assert out.shape == (B, output_size), out.shape
    assert jnp.allclose(out, ref, rtol=5e-3, atol=5e-3), (
        "mismatch vs reference: max abs err "
        f"{float(jnp.max(jnp.abs(out - ref)))}")

    print("KERNEL_OK")
</pallas_src>

<mosaic_0001>
module attributes {stable_mosaic.version = 11 : i64} {
  func.func @_fused_lstm_fc_kernel(%arg0: memref<2x8x4xf32, #tpu.memory_space<vmem>>, %arg1: memref<4x128xbf16, #tpu.memory_space<vmem>>, %arg2: memref<32x128xbf16, #tpu.memory_space<vmem>>, %arg3: memref<1x128xf32, #tpu.memory_space<vmem>>, %arg4: memref<32x128xbf16, #tpu.memory_space<vmem>>, %arg5: memref<32x128xbf16, #tpu.memory_space<vmem>>, %arg6: memref<1x128xf32, #tpu.memory_space<vmem>>, %arg7: memref<32x8xbf16, #tpu.memory_space<vmem>>, %arg8: memref<1x8xf32, #tpu.memory_space<vmem>>, %arg9: memref<2x8xf32, #tpu.memory_space<vmem>>) attributes {dimension_semantics = [], scalar_prefetch = 0 : i64, scratch_operands = 0 : i64, tpu.core_type = #tpu.core_type<tc>} {
    %c0 = arith.constant 0 : index
    %c0_0 = arith.constant 0 : index
    %0 = vector.load %arg1[%c0, %c0_0] : memref<4x128xbf16, #tpu.memory_space<vmem>>, vector<4x128xbf16>
    %c0_1 = arith.constant 0 : index
    %c0_2 = arith.constant 0 : index
    %1 = vector.load %arg4[%c0_1, %c0_2] : memref<32x128xbf16, #tpu.memory_space<vmem>>, vector<32x128xbf16>
    %c0_3 = arith.constant 0 : index
    %c0_4 = arith.constant 0 : index
    %2 = vector.load %arg2[%c0_3, %c0_4] : memref<32x128xbf16, #tpu.memory_space<vmem>>, vector<32x128xbf16>
    %c0_5 = arith.constant 0 : index
    %c0_6 = arith.constant 0 : index
    %3 = vector.load %arg5[%c0_5, %c0_6] : memref<32x128xbf16, #tpu.memory_space<vmem>>, vector<32x128xbf16>
    %c0_7 = arith.constant 0 : index
    %c0_8 = arith.constant 0 : index
    %4 = vector.load %arg3[%c0_7, %c0_8] : memref<1x128xf32, #tpu.memory_space<vmem>>, vector<1x128xf32>
    %c0_9 = arith.constant 0 : index
    %c0_10 = arith.constant 0 : index
    %5 = vector.load %arg6[%c0_9, %c0_10] : memref<1x128xf32, #tpu.memory_space<vmem>>, vector<1x128xf32>
    %c0_11 = arith.constant 0 : index
    %c0_12 = arith.constant 0 : index
    %c0_13 = arith.constant 0 : index
    %6 = vector.load %arg0[%c0_11, %c0_12, %c0_13] : memref<2x8x4xf32, #tpu.memory_space<vmem>>, vector<2x8x4xf32>
    %7 = vector.shape_cast %6 : vector<2x8x4xf32> to vector<16x4xf32>
    %8 = arith.truncf %7 : vector<16x4xf32> to vector<16x4xbf16>
    %cst = arith.constant dense<0.000000e+00> : vector<16x128xf32>
    %9 = tpu.matmul %8, %0, %cst {dimension_numbers = #tpu.dot_dimension_numbers<[1], [0], [0], [1], [0, 0, 1, 1], [], []>} : vector<16x4xbf16>, vector<4x128xbf16>, vector<16x128xf32> -> vector<16x128xf32>
    %10 = vector.shape_cast %9 : vector<16x128xf32> to vector<2x8x128xf32>
    %11 = vector.shape_cast %4 : vector<1x128xf32> to vector<1x1x128xf32>
    %12 = vector.broadcast %11 : vector<1x1x128xf32> to vector<2x8x128xf32>
    %13 = arith.addf %10, %12 : vector<2x8x128xf32>
    %cst_14 = arith.constant 0.000000e+00 : bf16
    %14 = vector.broadcast %cst_14 : bf16 to vector<2x32xbf16>
    %cst_15 = arith.constant 0.000000e+00 : bf16
    %15 = vector.broadcast %cst_15 : bf16 to vector<2x32xbf16>
    %cst_16 = arith.constant 0.000000e+00 : f32
    %16 = vector.broadcast %cst_16 : f32 to vector<2x32xf32>
    %cst_17 = arith.constant 0.000000e+00 : f32
    %17 = vector.broadcast %cst_17 : f32 to vector<2x32xf32>
    %18 = vector.extract_strided_slice %13 {offsets = [0, 0, 0], sizes = [2, 1, 128], strides = [1, 1, 1]} : vector<2x8x128xf32> to vector<2x1x128xf32>
    %19 = vector.shape_cast %18 : vector<2x1x128xf32> to vector<2x128xf32>
    %cst_18 = arith.constant dense<0.000000e+00> : vector<2x128xf32>
    %20 = tpu.matmul %14, %2, %cst_18 {dimension_numbers = #tpu.dot_dimension_numbers<[1], [0], [0], [1], [0, 0, 1, 1], [], []>} : vector<2x32xbf16>, vector<32x128xbf16>, vector<2x128xf32> -> vector<2x128xf32>
    %21 = arith.addf %19, %20 : vector<2x128xf32>
    %22 = vector.extract_strided_slice %21 {offsets = [0, 0], sizes = [2, 96], strides = [1, 1]} : vector<2x128xf32> to vector<2x96xf32>
    %23 = arith.negf %22 : vector<2x96xf32>
    %24 = math.exp %23 : vector<2x96xf32>
    %cst_19 = arith.constant 1.000000e+00 : f32
    %25 = vector.broadcast %cst_19 : f32 to vector<2x96xf32>
    %26 = arith.addf %25, %24 : vector<2x96xf32>
    %27 = arith.divf %25, %26 : vector<2x96xf32>
    %28 = vector.extract_strided_slice %21 {offsets = [0, 96], sizes = [2, 32], strides = [1, 1]} : vector<2x128xf32> to vector<2x32xf32>
    %29 = math.tanh %28 : vector<2x32xf32>
    %30 = vector.extract_strided_slice %27 {offsets = [0, 0], sizes = [2, 32], strides = [1, 1]} : vector<2x96xf32> to vector<2x32xf32>
    %31 = vector.extract_strided_slice %27 {offsets = [0, 32], sizes = [2, 32], strides = [1, 1]} : vector<2x96xf32> to vector<2x32xf32>
    %32 = vector.extract_strided_slice %27 {offsets = [0, 64], sizes = [2, 32], strides = [1, 1]} : vector<2x96xf32> to vector<2x32xf32>
    %33 = arith.mulf %31, %16 : vector<2x32xf32>
    %34 = arith.mulf %30, %29 : vector<2x32xf32>
    %35 = arith.addf %33, %34 : vector<2x32xf32>
    %36 = math.tanh %35 : vector<2x32xf32>
    %37 = arith.mulf %32, %36 : vector<2x32xf32>
    %38 = arith.truncf %37 : vector<2x32xf32> to vector<2x32xbf16>
    %39 = vector.extract_strided_slice %13 {offsets = [0, 1, 0], sizes = [2, 1, 128], strides = [1, 1, 1]} : vector<2x8x128xf32> to vector<2x1x128xf32>
    %40 = vector.shape_cast %39 : vector<2x1x128xf32> to vector<2x128xf32>
    %cst_20 = arith.constant dense<0.000000e+00> : vector<2x128xf32>
    %41 = tpu.matmul %38, %2, %cst_20 {dimension_numbers = #tpu.dot_dimension_numbers<[1], [0], [0], [1], [0, 0, 1, 1], [], []>} : vector<2x32xbf16>, vector<32x128xbf16>, vector<2x128xf32> -> vector<2x128xf32>
    %42 = arith.addf %40, %41 : vector<2x128xf32>
    %43 = vector.extract_strided_slice %42 {offsets = [0, 0], sizes = [2, 96], strides = [1, 1]} : vector<2x128xf32> to vector<2x96xf32>
    %44 = arith.negf %43 : vector<2x96xf32>
    %45 = math.exp %44 : vector<2x96xf32>
    %cst_21 = arith.constant 1.000000e+00 : f32
    %46 = vector.broadcast %cst_21 : f32 to vector<2x96xf32>
    %47 = arith.addf %46, %45 : vector<2x96xf32>
    %48 = arith.divf %46, %47 : vector<2x96xf32>
    %49 = vector.extract_strided_slice %42 {offsets = [0, 96], sizes = [2, 32], strides = [1, 1]} : vector<2x128xf32> to vector<2x32xf32>
    %50 = math.tanh %49 : vector<2x32xf32>
    %51 = vector.extract_strided_slice %48 {offsets = [0, 0], sizes = [2, 32], strides = [1, 1]} : vector<2x96xf32> to vector<2x32xf32>
    %52 = vector.extract_strided_slice %48 {offsets = [0, 32], sizes = [2, 32], strides = [1, 1]} : vector<2x96xf32> to vector<2x32xf32>
    %53 = vector.extract_strided_slice %48 {offsets = [0, 64], sizes = [2, 32], strides = [1, 1]} : vector<2x96xf32> to vector<2x32xf32>
    %54 = arith.mulf %52, %35 : vector<2x32xf32>
    %55 = arith.mulf %51, %50 : vector<2x32xf32>
    %56 = arith.addf %54, %55 : vector<2x32xf32>
    %57 = math.tanh %56 : vector<2x32xf32>
    %58 = arith.mulf %53, %57 : vector<2x32xf32>
    %59 = arith.truncf %58 : vector<2x32xf32> to vector<2x32xbf16>
    %cst_22 = arith.constant dense<0.000000e+00> : vector<2x128xf32>
    %60 = tpu.matmul %38, %1, %cst_22 {dimension_numbers = #tpu.dot_dimension_numbers<[1], [0], [0], [1], [0, 0, 1, 1], [], []>} : vector<2x32xbf16>, vector<32x128xbf16>, vector<2x128xf32> -> vector<2x128xf32>
    %61 = vector.broadcast %5 : vector<1x128xf32> to vector<2x128xf32>
    %62 = arith.addf %60, %61 : vector<2x128xf32>
    %cst_23 = arith.constant dense<0.000000e+00> : vector<2x128xf32>
    %63 = tpu.matmul %15, %3, %cst_23 {dimension_numbers = #tpu.dot_dimension_numbers<[1], [0], [0], [1], [0, 0, 1, 1], [], []>} : vector<2x32xbf16>, vector<32x128xbf16>, vector<2x128xf32> -> vector<2x128xf32>
    %64 = arith.addf %62, %63 : vector<2x128xf32>
    %65 = vector.extract_strided_slice %64 {offsets = [0, 0], sizes = [2, 96], strides = [1, 1]} : vector<2x128xf32> to vector<2x96xf32>
    %66 = arith.negf %65 : vector<2x96xf32>
    %67 = math.exp %66 : vector<2x96xf32>
    %cst_24 = arith.constant 1.000000e+00 : f32
    %68 = vector.broadcast %cst_24 : f32 to vector<2x96xf32>
    %69 = arith.addf %68, %67 : vector<2x96xf32>
    %70 = arith.divf %68, %69 : vector<2x96xf32>
    %71 = vector.extract_strided_slice %64 {offsets = [0, 96], sizes = [2, 32], strides = [1, 1]} : vector<2x128xf32> to vector<2x32xf32>
    %72 = math.tanh %71 : vector<2x32xf32>
    %73 = vector.extract_strided_slice %70 {offsets = [0, 0], sizes = [2, 32], strides = [1, 1]} : vector<2x96xf32> to vector<2x32xf32>
    %74 = vector.extract_strided_slice %70 {offsets = [0, 32], sizes = [2, 32], strides = [1, 1]} : vector<2x96xf32> to vector<2x32xf32>
    %75 = vector.extract_strided_slice %70 {offsets = [0, 64], sizes = [2, 32], strides = [1, 1]} : vector<2x96xf32> to vector<2x32xf32>
    %76 = arith.mulf %74, %17 : vector<2x32xf32>
    %77 = arith.mulf %73, %72 : vector<2x32xf32>
    %78 = arith.addf %76, %77 : vector<2x32xf32>
    %79 = math.tanh %78 : vector<2x32xf32>
    %80 = arith.mulf %75, %79 : vector<2x32xf32>
    %81 = arith.truncf %80 : vector<2x32xf32> to vector<2x32xbf16>
    %82 = vector.extract_strided_slice %13 {offsets = [0, 2, 0], sizes = [2, 1, 128], strides = [1, 1, 1]} : vector<2x8x128xf32> to vector<2x1x128xf32>
    %83 = vector.shape_cast %82 : vector<2x1x128xf32> to vector<2x128xf32>
    %cst_25 = arith.constant dense<0.000000e+00> : vector<2x128xf32>
    %84 = tpu.matmul %59, %2, %cst_25 {dimension_numbers = #tpu.dot_dimension_numbers<[1], [0], [0], [1], [0, 0, 1, 1], [], []>} : vector<2x32xbf16>, vector<32x128xbf16>, vector<2x128xf32> -> vector<2x128xf32>
    %85 = arith.addf %83, %84 : vector<2x128xf32>
    %86 = vector.extract_strided_slice %85 {offsets = [0, 0], sizes = [2, 96], strides = [1, 1]} : vector<2x128xf32> to vector<2x96xf32>
    %87 = arith.negf %86 : vector<2x96xf32>
    %88 = math.exp %87 : vector<2x96xf32>
    %cst_26 = arith.constant 1.000000e+00 : f32
    %89 = vector.broadcast %cst_26 : f32 to vector<2x96xf32>
    %90 = arith.addf %89, %88 : vector<2x96xf32>
    %91 = arith.divf %89, %90 : vector<2x96xf32>
    %92 = vector.extract_strided_slice %85 {offsets = [0, 96], sizes = [2, 32], strides = [1, 1]} : vector<2x128xf32> to vector<2x32xf32>
    %93 = math.tanh %92 : vector<2x32xf32>
    %94 = vector.extract_strided_slice %91 {offsets = [0, 0], sizes = [2, 32], strides = [1, 1]} : vector<2x96xf32> to vector<2x32xf32>
    %95 = vector.extract_strided_slice %91 {offsets = [0, 32], sizes = [2, 32], strides = [1, 1]} : vector<2x96xf32> to vector<2x32xf32>
    %96 = vector.extract_strided_slice %91 {offsets = [0, 64], sizes = [2, 32], strides = [1, 1]} : vector<2x96xf32> to vector<2x32xf32>
    %97 = arith.mulf %95, %56 : vector<2x32xf32>
    %98 = arith.mulf %94, %93 : vector<2x32xf32>
    %99 = arith.addf %97, %98 : vector<2x32xf32>
    %100 = math.tanh %99 : vector<2x32xf32>
    %101 = arith.mulf %96, %100 : vector<2x32xf32>
    %102 = arith.truncf %101 : vector<2x32xf32> to vector<2x32xbf16>
    %cst_27 = arith.constant dense<0.000000e+00> : vector<2x128xf32>
    %103 = tpu.matmul %59, %1, %cst_27 {dimension_numbers = #tpu.dot_dimension_numbers<[1], [0], [0], [1], [0, 0, 1, 1], [], []>} : vector<2x32xbf16>, vector<32x128xbf16>, vector<2x128xf32> -> vector<2x128xf32>
    %104 = vector.broadcast %5 : vector<1x128xf32> to vector<2x128xf32>
    %105 = arith.addf %103, %104 : vector<2x128xf32>
    %cst_28 = arith.constant dense<0.000000e+00> : vector<2x128xf32>
    %106 = tpu.matmul %81, %3, %cst_28 {dimension_numbers = #tpu.dot_dimension_numbers<[1], [0], [0], [1], [0, 0, 1, 1], [], []>} : vector<2x32xbf16>, vector<32x128xbf16>, vector<2x128xf32> -> vector<2x128xf32>
    %107 = arith.addf %105, %106 : vector<2x128xf32>
    %108 = vector.extract_strided_slice %107 {offsets = [0, 0], sizes = [2, 96], strides = [1, 1]} : vector<2x128xf32> to vector<2x96xf32>
    %109 = arith.negf %108 : vector<2x96xf32>
    %110 = math.exp %109 : vector<2x96xf32>
    %cst_29 = arith.constant 1.000000e+00 : f32
    %111 = vector.broadcast %cst_29 : f32 to vector<2x96xf32>
    %112 = arith.addf %111, %110 : vector<2x96xf32>
    %113 = arith.divf %111, %112 : vector<2x96xf32>
    %114 = vector.extract_strided_slice %107 {offsets = [0, 96], sizes = [2, 32], strides = [1, 1]} : vector<2x128xf32> to vector<2x32xf32>
    %115 = math.tanh %114 : vector<2x32xf32>
    %116 = vector.extract_strided_slice %113 {offsets = [0, 0], sizes = [2, 32], strides = [1, 1]} : vector<2x96xf32> to vector<2x32xf32>
    %117 = vector.extract_strided_slice %113 {offsets = [0, 32], sizes = [2, 32], strides = [1, 1]} : vector<2x96xf32> to vector<2x32xf32>
    %118 = vector.extract_strided_slice %113 {offsets = [0, 64], sizes = [2, 32], strides = [1, 1]} : vector<2x96xf32> to vector<2x32xf32>
    %119 = arith.mulf %117, %78 : vector<2x32xf32>
    %120 = arith.mulf %116, %115 : vector<2x32xf32>
    %121 = arith.addf %119, %120 : vector<2x32xf32>
    %122 = math.tanh %121 : vector<2x32xf32>
    %123 = arith.mulf %118, %122 : vector<2x32xf32>
    %124 = arith.truncf %123 : vector<2x32xf32> to vector<2x32xbf16>
    %125 = vector.extract_strided_slice %13 {offsets = [0, 3, 0], sizes = [2, 1, 128], strides = [1, 1, 1]} : vector<2x8x128xf32> to vector<2x1x128xf32>
    %126 = vector.shape_cast %125 : vector<2x1x128xf32> to vector<2x128xf32>
    %cst_30 = arith.constant dense<0.000000e+00> : vector<2x128xf32>
    %127 = tpu.matmul %102, %2, %cst_30 {dimension_numbers = #tpu.dot_dimension_numbers<[1], [0], [0], [1], [0, 0, 1, 1], [], []>} : vector<2x32xbf16>, vector<32x128xbf16>, vector<2x128xf32> -> vector<2x128xf32>
    %128 = arith.addf %126, %127 : vector<2x128xf32>
    %129 = vector.extract_strided_slice %128 {offsets = [0, 0], sizes = [2, 96], strides = [1, 1]} : vector<2x128xf32> to vector<2x96xf32>
    %130 = arith.negf %129 : vector<2x96xf32>
    %131 = math.exp %130 : vector<2x96xf32>
    %cst_31 = arith.constant 1.000000e+00 : f32
    %132 = vector.broadcast %cst_31 : f32 to vector<2x96xf32>
    %133 = arith.addf %132, %131 : vector<2x96xf32>
    %134 = arith.divf %132, %133 : vector<2x96xf32>
    %135 = vector.extract_strided_slice %128 {offsets = [0, 96], sizes = [2, 32], strides = [1, 1]} : vector<2x128xf32> to vector<2x32xf32>
    %136 = math.tanh %135 : vector<2x32xf32>
    %137 = vector.extract_strided_slice %134 {offsets = [0, 0], sizes = [2, 32], strides = [1, 1]} : vector<2x96xf32> to vector<2x32xf32>
    %138 = vector.extract_strided_slice %134 {offsets = [0, 32], sizes = [2, 32], strides = [1, 1]} : vector<2x96xf32> to vector<2x32xf32>
    %139 = vector.extract_strided_slice %134 {offsets = [0, 64], sizes = [2, 32], strides = [1, 1]} : vector<2x96xf32> to vector<2x32xf32>
    %140 = arith.mulf %138, %99 : vector<2x32xf32>
    %141 = arith.mulf %137, %136 : vector<2x32xf32>
    %142 = arith.addf %140, %141 : vector<2x32xf32>
    %143 = math.tanh %142 : vector<2x32xf32>
    %144 = arith.mulf %139, %143 : vector<2x32xf32>
    %145 = arith.truncf %144 : vector<2x32xf32> to vector<2x32xbf16>
    %cst_32 = arith.constant dense<0.000000e+00> : vector<2x128xf32>
    %146 = tpu.matmul %102, %1, %cst_32 {dimension_numbers = #tpu.dot_dimension_numbers<[1], [0], [0], [1], [0, 0, 1, 1], [], []>} : vector<2x32xbf16>, vector<32x128xbf16>, vector<2x128xf32> -> vector<2x128xf32>
    %147 = vector.broadcast %5 : vector<1x128xf32> to vector<2x128xf32>
    %148 = arith.addf %146, %147 : vector<2x128xf32>
    %cst_33 = arith.constant dense<0.000000e+00> : vector<2x128xf32>
    %149 = tpu.matmul %124, %3, %cst_33 {dimension_numbers = #tpu.dot_dimension_numbers<[1], [0], [0], [1], [0, 0, 1, 1], [], []>} : vector<2x32xbf16>, vector<32x128xbf16>, vector<2x128xf32> -> vector<2x128xf32>
    %150 = arith.addf %148, %149 : vector<2x128xf32>
    %151 = vector.extract_strided_slice %150 {offsets = [0, 0], sizes = [2, 96], strides = [1, 1]} : vector<2x128xf32> to vector<2x96xf32>
    %152 = arith.negf %151 : vector<2x96xf32>
    %153 = math.exp %152 : vector<2x96xf32>
    %cst_34 = arith.constant 1.000000e+00 : f32
    %154 = vector.broadcast %cst_34 : f32 to vector<2x96xf32>
    %155 = arith.addf %154, %153 : vector<2x96xf32>
    %156 = arith.divf %154, %155 : vector<2x96xf32>
    %157 = vector.extract_strided_slice %150 {offsets = [0, 96], sizes = [2, 32], strides = [1, 1]} : vector<2x128xf32> to vector<2x32xf32>
    %158 = math.tanh %157 : vector<2x32xf32>
    %159 = vector.extract_strided_slice %156 {offsets = [0, 0], sizes = [2, 32], strides = [1, 1]} : vector<2x96xf32> to vector<2x32xf32>
    %160 = vector.extract_strided_slice %156 {offsets = [0, 32], sizes = [2, 32], strides = [1, 1]} : vector<2x96xf32> to vector<2x32xf32>
    %161 = vector.extract_strided_slice %156 {offsets = [0, 64], sizes = [2, 32], strides = [1, 1]} : vector<2x96xf32> to vector<2x32xf32>
    %162 = arith.mulf %160, %121 : vector<2x32xf32>
    %163 = arith.mulf %159, %158 : vector<2x32xf32>
    %164 = arith.addf %162, %163 : vector<2x32xf32>
    %165 = math.tanh %164 : vector<2x32xf32>
    %166 = arith.mulf %161, %165 : vector<2x32xf32>
    %167 = arith.truncf %166 : vector<2x32xf32> to vector<2x32xbf16>
    %168 = vector.extract_strided_slice %13 {offsets = [0, 4, 0], sizes = [2, 1, 128], strides = [1, 1, 1]} : vector<2x8x128xf32> to vector<2x1x128xf32>
    %169 = vector.shape_cast %168 : vector<2x1x128xf32> to vector<2x128xf32>
    %cst_35 = arith.constant dense<0.000000e+00> : vector<2x128xf32>
    %170 = tpu.matmul %145, %2, %cst_35 {dimension_numbers = #tpu.dot_dimension_numbers<[1], [0], [0], [1], [0, 0, 1, 1], [], []>} : vector<2x32xbf16>, vector<32x128xbf16>, vector<2x128xf32> -> vector<2x128xf32>
    %171 = arith.addf %169, %170 : vector<2x128xf32>
    %172 = vector.extract_strided_slice %171 {offsets = [0, 0], sizes = [2, 96], strides = [1, 1]} : vector<2x128xf32> to vector<2x96xf32>
    %173 = arith.negf %172 : vector<2x96xf32>
    %174 = math.exp %173 : vector<2x96xf32>
    %cst_36 = arith.constant 1.000000e+00 : f32
    %175 = vector.broadcast %cst_36 : f32 to vector<2x96xf32>
    %176 = arith.addf %175, %174 : vector<2x96xf32>
    %177 = arith.divf %175, %176 : vector<2x96xf32>
    %178 = vector.extract_strided_slice %171 {offsets = [0, 96], sizes = [2, 32], strides = [1, 1]} : vector<2x128xf32> to vector<2x32xf32>
    %179 = math.tanh %178 : vector<2x32xf32>
    %180 = vector.extract_strided_slice %177 {offsets = [0, 0], sizes = [2, 32], strides = [1, 1]} : vector<2x96xf32> to vector<2x32xf32>
    %181 = vector.extract_strided_slice %177 {offsets = [0, 32], sizes = [2, 32], strides = [1, 1]} : vector<2x96xf32> to vector<2x32xf32>
    %182 = vector.extract_strided_slice %177 {offsets = [0, 64], sizes = [2, 32], strides = [1, 1]} : vector<2x96xf32> to vector<2x32xf32>
    %183 = arith.mulf %181, %142 : vector<2x32xf32>
    %184 = arith.mulf %180, %179 : vector<2x32xf32>
    %185 = arith.addf %183, %184 : vector<2x32xf32>
    %186 = math.tanh %185 : vector<2x32xf32>
    %187 = arith.mulf %182, %186 : vector<2x32xf32>
    %188 = arith.truncf %187 : vector<2x32xf32> to vector<2x32xbf16>
    %cst_37 = arith.constant dense<0.000000e+00> : vector<2x128xf32>
    %189 = tpu.matmul %145, %1, %cst_37 {dimension_numbers = #tpu.dot_dimension_numbers<[1], [0], [0], [1], [0, 0, 1, 1], [], []>} : vector<2x32xbf16>, vector<32x128xbf16>, vector<2x128xf32> -> vector<2x128xf32>
    %190 = vector.broadcast %5 : vector<1x128xf32> to vector<2x128xf32>
    %191 = arith.addf %189, %190 : vector<2x128xf32>
    %cst_38 = arith.constant dense<0.000000e+00> : vector<2x128xf32>
    %192 = tpu.matmul %167, %3, %cst_38 {dimension_numbers = #tpu.dot_dimension_numbers<[1], [0], [0], [1], [0, 0, 1, 1], [], []>} : vector<2x32xbf16>, vector<32x128xbf16>, vector<2x128xf32> -> vector<2x128xf32>
    %193 = arith.addf %191, %192 : vector<2x128xf32>
    %194 = vector.extract_strided_slice %193 {offsets = [0, 0], sizes = [2, 96], strides = [1, 1]} : vector<2x128xf32> to vector<2x96xf32>
    %195 = arith.negf %194 : vector<2x96xf32>
    %196 = math.exp %195 : vector<2x96xf32>
    %cst_39 = arith.constant 1.000000e+00 : f32
    %197 = vector.broadcast %cst_39 : f32 to vector<2x96xf32>
    %198 = arith.addf %197, %196 : vector<2x96xf32>
    %199 = arith.divf %197, %198 : vector<2x96xf32>
    %200 = vector.extract_strided_slice %193 {offsets = [0, 96], sizes = [2, 32], strides = [1, 1]} : vector<2x128xf32> to vector<2x32xf32>
    %201 = math.tanh %200 : vector<2x32xf32>
    %202 = vector.extract_strided_slice %199 {offsets = [0, 0], sizes = [2, 32], strides = [1, 1]} : vector<2x96xf32> to vector<2x32xf32>
    %203 = vector.extract_strided_slice %199 {offsets = [0, 32], sizes = [2, 32], strides = [1, 1]} : vector<2x96xf32> to vector<2x32xf32>
    %204 = vector.extract_strided_slice %199 {offsets = [0, 64], sizes = [2, 32], strides = [1, 1]} : vector<2x96xf32> to vector<2x32xf32>
    %205 = arith.mulf %203, %164 : vector<2x32xf32>
    %206 = arith.mulf %202, %201 : vector<2x32xf32>
    %207 = arith.addf %205, %206 : vector<2x32xf32>
    %208 = math.tanh %207 : vector<2x32xf32>
    %209 = arith.mulf %204, %208 : vector<2x32xf32>
    %210 = arith.truncf %209 : vector<2x32xf32> to vector<2x32xbf16>
    %211 = vector.extract_strided_slice %13 {offsets = [0, 5, 0], sizes = [2, 1, 128], strides = [1, 1, 1]} : vector<2x8x128xf32> to vector<2x1x128xf32>
    %212 = vector.shape_cast %211 : vector<2x1x128xf32> to vector<2x128xf32>
    %cst_40 = arith.constant dense<0.000000e+00> : vector<2x128xf32>
    %213 = tpu.matmul %188, %2, %cst_40 {dimension_numbers = #tpu.dot_dimension_numbers<[1], [0], [0], [1], [0, 0, 1, 1], [], []>} : vector<2x32xbf16>, vector<32x128xbf16>, vector<2x128xf32> -> vector<2x128xf32>
    %214 = arith.addf %212, %213 : vector<2x128xf32>
    %215 = vector.extract_strided_slice %214 {offsets = [0, 0], sizes = [2, 96], strides = [1, 1]} : vector<2x128xf32> to vector<2x96xf32>
    %216 = arith.negf %215 : vector<2x96xf32>
    %217 = math.exp %216 : vector<2x96xf32>
    %cst_41 = arith.constant 1.000000e+00 : f32
    %218 = vector.broadcast %cst_41 : f32 to vector<2x96xf32>
    %219 = arith.addf %218, %217 : vector<2x96xf32>
    %220 = arith.divf %218, %219 : vector<2x96xf32>
    %221 = vector.extract_strided_slice %214 {offsets = [0, 96], sizes = [2, 32], strides = [1, 1]} : vector<2x128xf32> to vector<2x32xf32>
    %222 = math.tanh %221 : vector<2x32xf32>
    %223 = vector.extract_strided_slice %220 {offsets = [0, 0], sizes = [2, 32], strides = [1, 1]} : vector<2x96xf32> to vector<2x32xf32>
    %224 = vector.extract_strided_slice %220 {offsets = [0, 32], sizes = [2, 32], strides = [1, 1]} : vector<2x96xf32> to vector<2x32xf32>
    %225 = vector.extract_strided_slice %220 {offsets = [0, 64], sizes = [2, 32], strides = [1, 1]} : vector<2x96xf32> to vector<2x32xf32>
    %226 = arith.mulf %224, %185 : vector<2x32xf32>
    %227 = arith.mulf %223, %222 : vector<2x32xf32>
    %228 = arith.addf %226, %227 : vector<2x32xf32>
    %229 = math.tanh %228 : vector<2x32xf32>
    %230 = arith.mulf %225, %229 : vector<2x32xf32>
    %231 = arith.truncf %230 : vector<2x32xf32> to vector<2x32xbf16>
    %cst_42 = arith.constant dense<0.000000e+00> : vector<2x128xf32>
    %232 = tpu.matmul %188, %1, %cst_42 {dimension_numbers = #tpu.dot_dimension_numbers<[1], [0], [0], [1], [0, 0, 1, 1], [], []>} : vector<2x32xbf16>, vector<32x128xbf16>, vector<2x128xf32> -> vector<2x128xf32>
    %233 = vector.broadcast %5 : vector<1x128xf32> to vector<2x128xf32>
    %234 = arith.addf %232, %233 : vector<2x128xf32>
    %cst_43 = arith.constant dense<0.000000e+00> : vector<2x128xf32>
    %235 = tpu.matmul %210, %3, %cst_43 {dimension_numbers = #tpu.dot_dimension_numbers<[1], [0], [0], [1], [0, 0, 1, 1], [], []>} : vector<2x32xbf16>, vector<32x128xbf16>, vector<2x128xf32> -> vector<2x128xf32>
    %236 = arith.addf %234, %235 : vector<2x128xf32>
    %237 = vector.extract_strided_slice %236 {offsets = [0, 0], sizes = [2, 96], strides = [1, 1]} : vector<2x128xf32> to vector<2x96xf32>
    %238 = arith.negf %237 : vector<2x96xf32>
    %239 = math.exp %238 : vector<2x96xf32>
    %cst_44 = arith.constant 1.000000e+00 : f32
    %240 = vector.broadcast %cst_44 : f32 to vector<2x96xf32>
    %241 = arith.addf %240, %239 : vector<2x96xf32>
    %242 = arith.divf %240, %241 : vector<2x96xf32>
    %243 = vector.extract_strided_slice %236 {offsets = [0, 96], sizes = [2, 32], strides = [1, 1]} : vector<2x128xf32> to vector<2x32xf32>
    %244 = math.tanh %243 : vector<2x32xf32>
    %245 = vector.extract_strided_slice %242 {offsets = [0, 0], sizes = [2, 32], strides = [1, 1]} : vector<2x96xf32> to vector<2x32xf32>
    %246 = vector.extract_strided_slice %242 {offsets = [0, 32], sizes = [2, 32], strides = [1, 1]} : vector<2x96xf32> to vector<2x32xf32>
    %247 = vector.extract_strided_slice %242 {offsets = [0, 64], sizes = [2, 32], strides = [1, 1]} : vector<2x96xf32> to vector<2x32xf32>
    %248 = arith.mulf %246, %207 : vector<2x32xf32>
    %249 = arith.mulf %245, %244 : vector<2x32xf32>
    %250 = arith.addf %248, %249 : vector<2x32xf32>
    %251 = math.tanh %250 : vector<2x32xf32>
    %252 = arith.mulf %247, %251 : vector<2x32xf32>
    %253 = arith.truncf %252 : vector<2x32xf32> to vector<2x32xbf16>
    %254 = vector.extract_strided_slice %13 {offsets = [0, 6, 0], sizes = [2, 1, 128], strides = [1, 1, 1]} : vector<2x8x128xf32> to vector<2x1x128xf32>
    %255 = vector.shape_cast %254 : vector<2x1x128xf32> to vector<2x128xf32>
    %cst_45 = arith.constant dense<0.000000e+00> : vector<2x128xf32>
    %256 = tpu.matmul %231, %2, %cst_45 {dimension_numbers = #tpu.dot_dimension_numbers<[1], [0], [0], [1], [0, 0, 1, 1], [], []>} : vector<2x32xbf16>, vector<32x128xbf16>, vector<2x128xf32> -> vector<2x128xf32>
    %257 = arith.addf %255, %256 : vector<2x128xf32>
    %258 = vector.extract_strided_slice %257 {offsets = [0, 0], sizes = [2, 96], strides = [1, 1]} : vector<2x128xf32> to vector<2x96xf32>
    %259 = arith.negf %258 : vector<2x96xf32>
    %260 = math.exp %259 : vector<2x96xf32>
    %cst_46 = arith.constant 1.000000e+00 : f32
    %261 = vector.broadcast %cst_46 : f32 to vector<2x96xf32>
    %262 = arith.addf %261, %260 : vector<2x96xf32>
    %263 = arith.divf %261, %262 : vector<2x96xf32>
    %264 = vector.extract_strided_slice %257 {offsets = [0, 96], sizes = [2, 32], strides = [1, 1]} : vector<2x128xf32> to vector<2x32xf32>
    %265 = math.tanh %264 : vector<2x32xf32>
    %266 = vector.extract_strided_slice %263 {offsets = [0, 0], sizes = [2, 32], strides = [1, 1]} : vector<2x96xf32> to vector<2x32xf32>
    %267 = vector.extract_strided_slice %263 {offsets = [0, 32], sizes = [2, 32], strides = [1, 1]} : vector<2x96xf32> to vector<2x32xf32>
    %268 = vector.extract_strided_slice %263 {offsets = [0, 64], sizes = [2, 32], strides = [1, 1]} : vector<2x96xf32> to vector<2x32xf32>
    %269 = arith.mulf %267, %228 : vector<2x32xf32>
    %270 = arith.mulf %266, %265 : vector<2x32xf32>
    %271 = arith.addf %269, %270 : vector<2x32xf32>
    %272 = math.tanh %271 : vector<2x32xf32>
    %273 = arith.mulf %268, %272 : vector<2x32xf32>
    %274 = arith.truncf %273 : vector<2x32xf32> to vector<2x32xbf16>
    %cst_47 = arith.constant dense<0.000000e+00> : vector<2x128xf32>
    %275 = tpu.matmul %231, %1, %cst_47 {dimension_numbers = #tpu.dot_dimension_numbers<[1], [0], [0], [1], [0, 0, 1, 1], [], []>} : vector<2x32xbf16>, vector<32x128xbf16>, vector<2x128xf32> -> vector<2x128xf32>
    %276 = vector.broadcast %5 : vector<1x128xf32> to vector<2x128xf32>
    %277 = arith.addf %275, %276 : vector<2x128xf32>
    %cst_48 = arith.constant dense<0.000000e+00> : vector<2x128xf32>
    %278 = tpu.matmul %253, %3, %cst_48 {dimension_numbers = #tpu.dot_dimension_numbers<[1], [0], [0], [1], [0, 0, 1, 1], [], []>} : vector<2x32xbf16>, vector<32x128xbf16>, vector<2x128xf32> -> vector<2x128xf32>
    %279 = arith.addf %277, %278 : vector<2x128xf32>
    %280 = vector.extract_strided_slice %279 {offsets = [0, 0], sizes = [2, 96], strides = [1, 1]} : vector<2x128xf32> to vector<2x96xf32>
    %281 = arith.negf %280 : vector<2x96xf32>
    %282 = math.exp %281 : vector<2x96xf32>
    %cst_49 = arith.constant 1.000000e+00 : f32
    %283 = vector.broadcast %cst_49 : f32 to vector<2x96xf32>
    %284 = arith.addf %283, %282 : vector<2x96xf32>
    %285 = arith.divf %283, %284 : vector<2x96xf32>
    %286 = vector.extract_strided_slice %279 {offsets = [0, 96], sizes = [2, 32], strides = [1, 1]} : vector<2x128xf32> to vector<2x32xf32>
    %287 = math.tanh %286 : vector<2x32xf32>
    %288 = vector.extract_strided_slice %285 {offsets = [0, 0], sizes = [2, 32], strides = [1, 1]} : vector<2x96xf32> to vector<2x32xf32>
    %289 = vector.extract_strided_slice %285 {offsets = [0, 32], sizes = [2, 32], strides = [1, 1]} : vector<2x96xf32> to vector<2x32xf32>
    %290 = vector.extract_strided_slice %285 {offsets = [0, 64], sizes = [2, 32], strides = [1, 1]} : vector<2x96xf32> to vector<2x32xf32>
    %291 = arith.mulf %289, %250 : vector<2x32xf32>
    %292 = arith.mulf %288, %287 : vector<2x32xf32>
    %293 = arith.addf %291, %292 : vector<2x32xf32>
    %294 = math.tanh %293 : vector<2x32xf32>
    %295 = arith.mulf %290, %294 : vector<2x32xf32>
    %296 = arith.truncf %295 : vector<2x32xf32> to vector<2x32xbf16>
    %297 = vector.extract_strided_slice %13 {offsets = [0, 7, 0], sizes = [2, 1, 128], strides = [1, 1, 1]} : vector<2x8x128xf32> to vector<2x1x128xf32>
    %298 = vector.shape_cast %297 : vector<2x1x128xf32> to vector<2x128xf32>
    %cst_50 = arith.constant dense<0.000000e+00> : vector<2x128xf32>
    %299 = tpu.matmul %274, %2, %cst_50 {dimension_numbers = #tpu.dot_dimension_numbers<[1], [0], [0], [1], [0, 0, 1, 1], [], []>} : vector<2x32xbf16>, vector<32x128xbf16>, vector<2x128xf32> -> vector<2x128xf32>
    %300 = arith.addf %298, %299 : vector<2x128xf32>
    %301 = vector.extract_strided_slice %300 {offsets = [0, 0], sizes = [2, 96], strides = [1, 1]} : vector<2x128xf32> to vector<2x96xf32>
    %302 = arith.negf %301 : vector<2x96xf32>
    %303 = math.exp %302 : vector<2x96xf32>
    %cst_51 = arith.constant 1.000000e+00 : f32
    %304 = vector.broadcast %cst_51 : f32 to vector<2x96xf32>
    %305 = arith.addf %304, %303 : vector<2x96xf32>
    %306 = arith.divf %304, %305 : vector<2x96xf32>
    %307 = vector.extract_strided_slice %300 {offsets = [0, 96], sizes = [2, 32], strides = [1, 1]} : vector<2x128xf32> to vector<2x32xf32>
    %308 = math.tanh %307 : vector<2x32xf32>
    %309 = vector.extract_strided_slice %306 {offsets = [0, 0], sizes = [2, 32], strides = [1, 1]} : vector<2x96xf32> to vector<2x32xf32>
    %310 = vector.extract_strided_slice %306 {offsets = [0, 32], sizes = [2, 32], strides = [1, 1]} : vector<2x96xf32> to vector<2x32xf32>
    %311 = vector.extract_strided_slice %306 {offsets = [0, 64], sizes = [2, 32], strides = [1, 1]} : vector<2x96xf32> to vector<2x32xf32>
    %312 = arith.mulf %310, %271 : vector<2x32xf32>
    %313 = arith.mulf %309, %308 : vector<2x32xf32>
    %314 = arith.addf %312, %313 : vector<2x32xf32>
    %315 = math.tanh %314 : vector<2x32xf32>
    %316 = arith.mulf %311, %315 : vector<2x32xf32>
    %317 = arith.truncf %316 : vector<2x32xf32> to vector<2x32xbf16>
    %cst_52 = arith.constant dense<0.000000e+00> : vector<2x128xf32>
    %318 = tpu.matmul %274, %1, %cst_52 {dimension_numbers = #tpu.dot_dimension_numbers<[1], [0], [0], [1], [0, 0, 1, 1], [], []>} : vector<2x32xbf16>, vector<32x128xbf16>, vector<2x128xf32> -> vector<2x128xf32>
    %319 = vector.broadcast %5 : vector<1x128xf32> to vector<2x128xf32>
    %320 = arith.addf %318, %319 : vector<2x128xf32>
    %cst_53 = arith.constant dense<0.000000e+00> : vector<2x128xf32>
    %321 = tpu.matmul %296, %3, %cst_53 {dimension_numbers = #tpu.dot_dimension_numbers<[1], [0], [0], [1], [0, 0, 1, 1], [], []>} : vector<2x32xbf16>, vector<32x128xbf16>, vector<2x128xf32> -> vector<2x128xf32>
    %322 = arith.addf %320, %321 : vector<2x128xf32>
    %323 = vector.extract_strided_slice %322 {offsets = [0, 0], sizes = [2, 96], strides = [1, 1]} : vector<2x128xf32> to vector<2x96xf32>
    %324 = arith.negf %323 : vector<2x96xf32>
    %325 = math.exp %324 : vector<2x96xf32>
    %cst_54 = arith.constant 1.000000e+00 : f32
    %326 = vector.broadcast %cst_54 : f32 to vector<2x96xf32>
    %327 = arith.addf %326, %325 : vector<2x96xf32>
    %328 = arith.divf %326, %327 : vector<2x96xf32>
    %329 = vector.extract_strided_slice %322 {offsets = [0, 96], sizes = [2, 32], strides = [1, 1]} : vector<2x128xf32> to vector<2x32xf32>
    %330 = math.tanh %329 : vector<2x32xf32>
    %331 = vector.extract_strided_slice %328 {offsets = [0, 0], sizes = [2, 32], strides = [1, 1]} : vector<2x96xf32> to vector<2x32xf32>
    %332 = vector.extract_strided_slice %328 {offsets = [0, 32], sizes = [2, 32], strides = [1, 1]} : vector<2x96xf32> to vector<2x32xf32>
    %333 = vector.extract_strided_slice %328 {offsets = [0, 64], sizes = [2, 32], strides = [1, 1]} : vector<2x96xf32> to vector<2x32xf32>
    %334 = arith.mulf %332, %293 : vector<2x32xf32>
    %335 = arith.mulf %331, %330 : vector<2x32xf32>
    %336 = arith.addf %334, %335 : vector<2x32xf32>
    %337 = math.tanh %336 : vector<2x32xf32>
    %338 = arith.mulf %333, %337 : vector<2x32xf32>
    %339 = arith.truncf %338 : vector<2x32xf32> to vector<2x32xbf16>
    %cst_55 = arith.constant dense<0.000000e+00> : vector<2x128xf32>
    %340 = tpu.matmul %317, %1, %cst_55 {dimension_numbers = #tpu.dot_dimension_numbers<[1], [0], [0], [1], [0, 0, 1, 1], [], []>} : vector<2x32xbf16>, vector<32x128xbf16>, vector<2x128xf32> -> vector<2x128xf32>
    %341 = vector.broadcast %5 : vector<1x128xf32> to vector<2x128xf32>
    %342 = arith.addf %340, %341 : vector<2x128xf32>
    %cst_56 = arith.constant dense<0.000000e+00> : vector<2x128xf32>
    %343 = tpu.matmul %339, %3, %cst_56 {dimension_numbers = #tpu.dot_dimension_numbers<[1], [0], [0], [1], [0, 0, 1, 1], [], []>} : vector<2x32xbf16>, vector<32x128xbf16>, vector<2x128xf32> -> vector<2x128xf32>
    %344 = arith.addf %342, %343 : vector<2x128xf32>
    %345 = vector.extract_strided_slice %344 {offsets = [0, 0], sizes = [2, 96], strides = [1, 1]} : vector<2x128xf32> to vector<2x96xf32>
    %346 = arith.negf %345 : vector<2x96xf32>
    %347 = math.exp %346 : vector<2x96xf32>
    %cst_57 = arith.constant 1.000000e+00 : f32
    %348 = vector.broadcast %cst_57 : f32 to vector<2x96xf32>
    %349 = arith.addf %348, %347 : vector<2x96xf32>
    %350 = arith.divf %348, %349 : vector<2x96xf32>
    %351 = vector.extract_strided_slice %344 {offsets = [0, 96], sizes = [2, 32], strides = [1, 1]} : vector<2x128xf32> to vector<2x32xf32>
    %352 = math.tanh %351 : vector<2x32xf32>
    %353 = vector.extract_strided_slice %350 {offsets = [0, 0], sizes = [2, 32], strides = [1, 1]} : vector<2x96xf32> to vector<2x32xf32>
    %354 = vector.extract_strided_slice %350 {offsets = [0, 32], sizes = [2, 32], strides = [1, 1]} : vector<2x96xf32> to vector<2x32xf32>
    %355 = vector.extract_strided_slice %350 {offsets = [0, 64], sizes = [2, 32], strides = [1, 1]} : vector<2x96xf32> to vector<2x32xf32>
    %356 = arith.mulf %354, %336 : vector<2x32xf32>
    %357 = arith.mulf %353, %352 : vector<2x32xf32>
    %358 = arith.addf %356, %357 : vector<2x32xf32>
    %359 = math.tanh %358 : vector<2x32xf32>
    %360 = arith.mulf %355, %359 : vector<2x32xf32>
    %361 = arith.truncf %360 : vector<2x32xf32> to vector<2x32xbf16>
    %c0_58 = arith.constant 0 : index
    %c0_59 = arith.constant 0 : index
    %362 = vector.load %arg7[%c0_58, %c0_59] : memref<32x8xbf16, #tpu.memory_space<vmem>>, vector<32x8xbf16>
    %cst_60 = arith.constant dense<0.000000e+00> : vector<2x8xf32>
    %363 = tpu.matmul %361, %362, %cst_60 {dimension_numbers = #tpu.dot_dimension_numbers<[1], [0], [0], [1], [0, 0, 1, 1], [], []>} : vector<2x32xbf16>, vector<32x8xbf16>, vector<2x8xf32> -> vector<2x8xf32>
    %c0_61 = arith.constant 0 : index
    %c0_62 = arith.constant 0 : index
    %364 = vector.load %arg8[%c0_61, %c0_62] : memref<1x8xf32, #tpu.memory_space<vmem>>, vector<1x8xf32>
    %365 = vector.broadcast %364 : vector<1x8xf32> to vector<2x8xf32>
    %366 = arith.addf %363, %365 : vector<2x8xf32>
    %c0_63 = arith.constant 0 : index
    %c0_64 = arith.constant 0 : index
    %367 = vector.load %arg9[%c0_63, %c0_64] : memref<2x8xf32, #tpu.memory_space<vmem>>, vector<2x8xf32>
    tpu.vector_store %arg9[%c0_63, %c0_64], %366 {strides = array<i32>} : memref<2x8xf32, #tpu.memory_space<vmem>>, vector<2x8xf32>,
    return
  }
}

</mosaic_0001>

<llo_original>
// kernel: lstm_fc_forward.1
$region0: #{lstm_fc_forward.1}
  #allocation0 [shape = 'u32[]', space=smem, size = 0x4, offset = 0x4, fixed_abs, tag = 'smem constant byte address 0x4 - core index']
  #allocation1 [shape = 'u32[144,128]{1,0:T(1,128)}', space=vmem, size = 0x12000, scoped, tag = 'internal scratch']
  %s0 = inlined_call_operand.vmem [shape: f32[2,8,4], index: 0, kind: input, shape index: {}]
  %s1 = inlined_call_operand.hbm [shape: bf16[4,128], index: 1, kind: input, shape index: {}]
  %s2 = inlined_call_operand.vmem [shape: bf16[32,128], index: 2, kind: input, shape index: {}]
  %s3 = inlined_call_operand.hbm [shape: f32[1,128], index: 3, kind: input, shape index: {}]
  %s4 = inlined_call_operand.vmem [shape: bf16[32,128], index: 4, kind: input, shape index: {}]
  %s5 = inlined_call_operand.vmem [shape: bf16[32,128], index: 5, kind: input, shape index: {}]
  %s6 = inlined_call_operand.hbm [shape: f32[1,128], index: 6, kind: input, shape index: {}]
  %s7 = inlined_call_operand.vmem [shape: bf16[32,8], index: 7, kind: input, shape index: {}]
  %s8 = inlined_call_operand.hbm [shape: f32[1,8], index: 8, kind: input, shape index: {}]
  %s9 = inlined_call_operand.hbm [shape: f32[2,8], index: 9, kind: output, shape index: {}]
  %s10 = sld [smem:[#allocation0]]
  $region62: #{lstm_fc_forward.1} parent=0
    _
  %s12 = ssub.s32 1, %s10
  %s13 = scalar_select 0, %s12, %s10
  $region1: #{lstm_fc_forward.1} parent=0
    #allocation2 [shape = 'u8[1024]{0}', space=vmem, size = 0x400, scoped, tag = 'input window, operand 1, single buffered']
    #allocation3 [shape = 's32[1]{0}', space=sflag, size = 0x4, scoped, tag = 'scoped memory for lstm_fc_forward.1']
    #allocation4 [shape = 's32[1]{0}', space=sflag, size = 0x4, scoped, tag = 'scoped memory for lstm_fc_forward.1']
    #allocation5 [shape = 'u8[512]{0}', space=vmem, size = 0x400, scoped, tag = 'input window, operand 3, single buffered']
    #allocation6 [shape = 's32[1]{0}', space=sflag, size = 0x4, scoped, tag = 'scoped memory for lstm_fc_forward.1']
    #allocation7 [shape = 'u8[512]{0}', space=vmem, size = 0x400, scoped, tag = 'input window, operand 6, single buffered']
    #allocation8 [shape = 'u8[512]{0}', space=vmem, size = 0x400, scoped, tag = 'input window, operand 8, single buffered']
    #allocation9 [shape = 's32[1]{0}', space=sflag, size = 0x4, scoped, tag = 'scoped memory for lstm_fc_forward.1']
    #allocation10 [shape = 'u8[1024]{0}', space=vmem, size = 0x400, scoped, tag = 'output window, operand 0, single buffered']
    %14 = vsyncpa [#allocation3], 0
    %15 = vsyncpa [#allocation6], 0
    %16 = vsyncpa [#allocation9], 0
    %17 = vsyncpa [#allocation4], 0
    // Predicated region
    $region2: #{lstm_fc_forward.1} parent=1 // pred_check
      _
    $region3: #{lstm_fc_forward.1} parent=1 // pred_check_branch
      %19 = sbr.rel (0) target = $region5
    $region4: #{lstm_fc_forward.1} parent=1 // pred_region
      _
    $region5: #{lstm_fc_forward.1} parent=1 // pred_fallthru
      _
    // Predicated region
    $region6: #{lstm_fc_forward.1} parent=1 // pred_check
      _
    $region7: #{lstm_fc_forward.1} parent=1 // pred_check_branch
      %21 = sbr.rel (0) target = $region9
    $region8: #{lstm_fc_forward.1} parent=1 // pred_region
      %s23 = ssub.s32 32, 32
      %24 = vsyncadd [#allocation3], %s23
      %s26 = sshll.u32 [#allocation2], 4
      %s27 = int_to_ptr.vmem [resolvable:$true] %s26
      %29 = dma.hbm_to_vmem [thread:$0]  %s1, 32, %s27, [#allocation3]
    $region9: #{lstm_fc_forward.1} parent=1 // pred_fallthru
      _
    // Predicated region
    $region10: #{lstm_fc_forward.1} parent=1 // pred_check
      _
    $region11: #{lstm_fc_forward.1} parent=1 // pred_check_branch
      %31 = sbr.rel (0) target = $region13
    $region12: #{lstm_fc_forward.1} parent=1 // pred_region
      _
    $region13: #{lstm_fc_forward.1} parent=1 // pred_fallthru
      _
    // Predicated region
    $region14: #{lstm_fc_forward.1} parent=1 // pred_check
      _
    $region15: #{lstm_fc_forward.1} parent=1 // pred_check_branch
      %33 = sbr.rel (0) target = $region17
    $region16: #{lstm_fc_forward.1} parent=1 // pred_region
      %s35 = ssub.s32 16, 16
      %36 = vsyncadd [#allocation6], %s35
      %s38 = sshll.u32 [#allocation5], 4
      %s39 = int_to_ptr.vmem [resolvable:$true] %s38
      %41 = dma.hbm_to_vmem [thread:$0]  %s3, 16, %s39, [#allocation6]
    $region17: #{lstm_fc_forward.1} parent=1 // pred_fallthru
      _
    // Predicated region
    $region18: #{lstm_fc_forward.1} parent=1 // pred_check
      _
    $region19: #{lstm_fc_forward.1} parent=1 // pred_check_branch
      %43 = sbr.rel (0) target = $region21
    $region20: #{lstm_fc_forward.1} parent=1 // pred_region
      _
    $region21: #{lstm_fc_forward.1} parent=1 // pred_fallthru
      _
    // Predicated region
    $region22: #{lstm_fc_forward.1} parent=1 // pred_check
      _
    $region23: #{lstm_fc_forward.1} parent=1 // pred_check_branch
      %45 = sbr.rel (0) target = $region25
    $region24: #{lstm_fc_forward.1} parent=1 // pred_region
      _
    $region25: #{lstm_fc_forward.1} parent=1 // pred_fallthru
      _
    // Predicated region
    $region26: #{lstm_fc_forward.1} parent=1 // pred_check
      _
    $region27: #{lstm_fc_forward.1} parent=1 // pred_check_branch
      %47 = sbr.rel (0) target = $region29
    $region28: #{lstm_fc_forward.1} parent=1 // pred_region
      %s49 = ssub.s32 16, 16
      %50 = vsyncadd [#allocation6], %s49
      %s52 = sshll.u32 [#allocation7], 4
      %s53 = int_to_ptr.vmem [resolvable:$true] %s52
      %55 = dma.hbm_to_vmem [thread:$0]  %s6, 16, %s53, [#allocation6]
    $region29: #{lstm_fc_forward.1} parent=1 // pred_fallthru
      _
    // Predicated region
    $region30: #{lstm_fc_forward.1} parent=1 // pred_check
      _
    $region31: #{lstm_fc_forward.1} parent=1 // pred_check_branch
      %57 = sbr.rel (0) target = $region33
    $region32: #{lstm_fc_forward.1} parent=1 // pred_region
      _
    $region33: #{lstm_fc_forward.1} parent=1 // pred_fallthru
      _
    // Predicated region
    $region34: #{lstm_fc_forward.1} parent=1 // pred_check
      _
    $region35: #{lstm_fc_forward.1} parent=1 // pred_check_branch
      %59 = sbr.rel (0) target = $region37
    $region36: #{lstm_fc_forward.1} parent=1 // pred_region
      %s61 = ssub.s32 16, 16
      %62 = vsyncadd [#allocation9], %s61
      %s64 = sshll.u32 [#allocation8], 4
      %s65 = int_to_ptr.vmem [resolvable:$true] %s64
      %67 = dma.hbm_to_vmem [thread:$0]  %s8, 16, %s65, [#allocation9]
    $region37: #{lstm_fc_forward.1} parent=1 // pred_fallthru
      _
    // Predicated region
    $region38: #{lstm_fc_forward.1} parent=1 // pred_check
      _
    $region39: #{lstm_fc_forward.1} parent=1 // pred_check_branch
      %69 = sbr.rel (0) target = $region41
    $region40: #{lstm_fc_forward.1} parent=1 // pred_region
      %70 = dma.done [#allocation3], 32
    $region41: #{lstm_fc_forward.1} parent=1 // pred_fallthru
      _
    // Predicated region
    $region42: #{lstm_fc_forward.1} parent=1 // pred_check
      _
    $region43: #{lstm_fc_forward.1} parent=1 // pred_check_branch
      %72 = sbr.rel (0) target = $region45
    $region44: #{lstm_fc_forward.1} parent=1 // pred_region
      %73 = dma.done [#allocation6], 16
    $region45: #{lstm_fc_forward.1} parent=1 // pred_fallthru
      _
    // Predicated region
    $region46: #{lstm_fc_forward.1} parent=1 // pred_check
      _
    $region47: #{lstm_fc_forward.1} parent=1 // pred_check_branch
      %75 = sbr.rel (0) target = $region49
    $region48: #{lstm_fc_forward.1} parent=1 // pred_region
      %76 = dma.done [#allocation6], 16
    $region49: #{lstm_fc_forward.1} parent=1 // pred_fallthru
      _
    // Predicated region
    $region50: #{lstm_fc_forward.1} parent=1 // pred_check
      _
    $region51: #{lstm_fc_forward.1} parent=1 // pred_check_branch
      %78 = sbr.rel (0) target = $region53
    $region52: #{lstm_fc_forward.1} parent=1 // pred_region
      %79 = dma.done [#allocation9], 16
    $region53: #{lstm_fc_forward.1} parent=1 // pred_fallthru
      _
    %v81 = vld [vmem:[#allocation2] sm:$0x3]
    %v82 = vld [vmem:[%s4] sm:$0xf]
    %v83 = vld [vmem:[%s4 + $0x4] sm:$0xf]
    %v84 = vld [vmem:[%s4 + $0x8] sm:$0xf]
    %v85 = vld [vmem:[%s4 + $0xc] sm:$0xf]
    %v86 = vld [vmem:[%s2] sm:$0xf]
    %v87 = vld [vmem:[%s2 + $0x4] sm:$0xf]
    %v88 = vld [vmem:[%s2 + $0x8] sm:$0xf]
    %v89 = vld [vmem:[%s2 + $0xc] sm:$0xf]
    %v90 = vld [vmem:[%s5] sm:$0xf]
    %v91 = vld [vmem:[%s5 + $0x4] sm:$0xf]
    %v92 = vld [vmem:[%s5 + $0x8] sm:$0xf]
    %v93 = vld [vmem:[%s5 + $0xc] sm:$0xf]
    %v94 = vld [vmem:[#allocation5] sm:$0x1]
    %v95 = vld [vmem:[#allocation7] sm:$0x1]
    %v96 = vld [vmem:[%s0] sm:$0xff]
    %v97 = vld [vmem:[%s0 + $0x8] sm:$0xff]
    %v98 = vpack.c.bf16 %v97, %v96
    %vm99 = vcmask 31744
    %v101 = vsel %vm99, %v98, 0
    %vm103 = vcmask 1041408
    %v105 = vsel %vm103, %v81, 0
    %107 = vmatprep.subr.bf16.mxu0 0
    %108 = vmatpush1.bf16.msra.mxu0 0
    %109 = vmatprep.subr.bf16.mxu0 0
    %110 = vmatpush1.bf16.msra.mxu0 0
    %111 = vmatprep.subr.bf16.mxu0 0
    %112 = vmatpush1.bf16.msra.mxu0 0
    %113 = vmatprep.subr.bf16.mxu0 0
    %114 = vmatpush1.bf16.msra.mxu0 0
    %115 = vmatprep.subr.bf16.mxu0 0
    %116 = vmatpush1.bf16.msra.mxu0 0
    %117 = vmatprep.subr.bf16.mxu0 0
    %118 = vmatpush1.bf16.msra.mxu0 0
    %119 = vmatprep.subr.bf16.mxu0 0
    %120 = vmatpush1.bf16.msra.mxu0 0
    %121 = vmatprep.subr.bf16.mxu0 0
    %122 = vmatpush1.bf16.msra.mxu0 %v105
    %123 = vmatprep.subr.bf16.mxu0 0
    %124 = vmatpush2.bf16.msra.mxu0 0
    %125 = vmatprep.subr.bf16.mxu0 0
    %126 = vmatpush2.bf16.msra.mxu0 0
    %127 = vmatprep.subr.bf16.mxu0 0
    %128 = vmatpush2.bf16.msra.mxu0 0
    %129 = vmatprep.subr.bf16.mxu0 0
    %130 = vmatpush2.bf16.msra.mxu0 0
    %131 = vmatprep.subr.bf16.mxu0 0
    %132 = vmatpush2.bf16.msra.mxu0 0
    %133 = vmatprep.subr.bf16.mxu0 0
    %134 = vmatpush2.bf16.msra.mxu0 0
    %135 = vmatprep.subr.bf16.mxu0 0
    %136 = vmatpush2.bf16.msra.mxu0 0
    %137 = vmatprep.subr.bf16.mxu0 0
    %138 = vmatpush2.bf16.msra.mxu0 0
    %139 = vmatprep.mubr.bf16.mxu0 0
    %140 = vmatmul.mubr.bf16.gmra.mxu0 %v101
    %v141 = vpop.f32.mrf.mxu0
    %v142 = vadd.f32 0.0, %v141
    %v143 = vpop.f32.mrf.mxu0
    %v144 = vpop.f32.mrf.mxu0
    %v145 = vadd.f32 0.0, %v144
    %v146 = vpop.f32.mrf.mxu0
    %147 = vdwg.mxu0
    %v149 = vlaneseq
    %v150 = vshrl.u32 %v149, 7
    %v151 = vsub.s32 0, %v150
    %v152 = vrot.slane %v94, %v151
    %v154 = vadd.f32 %v142, %v152
    %v155 = vadd.f32 %v145, %v152
    %v160 = vunpack.c.l.b16 %v86
    %v161 = vunpack.c.l.b16 %v87
    %v162 = vunpack.c.l.b16 %v88
    %v163 = vunpack.c.l.b16 %v89
    %v164 = vpack.c.b16 %v161, %v160
    %v165 = vpack.c.b16 %v163, %v162
    %vm168 = vcmask 261120
    %v170 = vsel %vm168, 0, 0
    %172 = vmatprep.subr.bf16.mxu0 0
    %173 = vmatpush1.bf16.msra.mxu0 0
    %174 = vmatprep.subr.bf16.mxu0 0
    %175 = vmatpush1.bf16.msra.mxu0 0
    %176 = vmatprep.subr.bf16.mxu0 0
    %177 = vmatpush1.bf16.msra.mxu0 0
    %178 = vmatprep.subr.bf16.mxu0 0
    %179 = vmatpush1.bf16.msra.mxu0 0
    %180 = vmatprep.subr.bf16.mxu0 0
    %181 = vmatpush1.bf16.msra.mxu0 0
    %182 = vmatprep.subr.bf16.mxu0 0
    %183 = vmatpush1.bf16.msra.mxu0 0
    %184 = vmatprep.subr.bf16.mxu0 0
    %185 = vmatpush1.bf16.msra.mxu0 %v165
    %186 = vmatprep.subr.bf16.mxu0 0
    %187 = vmatpush1.bf16.msra.mxu0 %v164
    %188 = vmatprep.subr.bf16.mxu0 0
    %189 = vmatpush2.bf16.msra.mxu0 0
    %190 = vmatprep.subr.bf16.mxu0 0
    %191 = vmatpush2.bf16.msra.mxu0 0
    %192 = vmatprep.subr.bf16.mxu0 0
    %193 = vmatpush2.bf16.msra.mxu0 0
    %194 = vmatprep.subr.bf16.mxu0 0
    %195 = vmatpush2.bf16.msra.mxu0 0
    %196 = vmatprep.subr.bf16.mxu0 0
    %197 = vmatpush2.bf16.msra.mxu0 0
    %198 = vmatprep.subr.bf16.mxu0 0
    %199 = vmatpush2.bf16.msra.mxu0 0
    %200 = vmatprep.subr.bf16.mxu0 0
    %201 = vmatpush2.bf16.msra.mxu0 0
    %202 = vmatprep.subr.bf16.mxu0 0
    %203 = vmatpush2.bf16.msra.mxu0 0
    %204 = vmatprep.mubr.bf16.mxu0 0
    %205 = vmatmul.mubr.bf16.gmra.mxu0 %v170
    %v206 = vpop.f32.mrf.mxu0
    %v207 = vadd.f32 0.0, %v206
    %v208 = vpop.f32.mrf.mxu0
    %v209 = vpop.f32.mrf.mxu0
    %v210 = vpop.f32.mrf.mxu0
    %211 = vdwg.mxu0
    %v213 = vrot.slane %v207, 1
    %v216 = vadd.f32 %v154, %v207
    %v217 = vadd.f32 %v155, %v213
    %v218 = vxor.u32 %v216, 2147483648
    %v219 = vxor.u32 %v217, 2147483648
    %v220 = vmul.f32 %v218, 1.442695
    %v221 = vpow.pop %v220
    %v222 = vmul.f32 %v219, 1.442695
    %v223 = vpow.pop %v222
    %v224 = vadd.f32 %v221, 1.0
    %v225 = vadd.f32 %v223, 1.0
    %v226 = vrcp.pop %v224
    %v227 = vmul.f32 1.0, %v226
    %v228 = vrcp.pop %v225
    %v229 = vmul.f32 1.0, %v228
    %v230 = vtanh.pop %v216
    %v231 = vtanh.pop %v217
    %v232 = vmul.f32 %v227, 0.0
    %v233 = vmul.f32 %v229, 0.0
    %236 = vrot.lane.b32.xlu0 %v230, 32
    %v237 = vpop.permute.xlu0 %236
    %238 = vrot.lane.b32.xlu0 %v231, 32
    %v239 = vpop.permute.xlu0 %238
    %v242 = vmul.f32 %v227, %v237
    %v243 = vmul.f32 %v229, %v239
    %246 = vrot.lane.b32.xlu0 %v242, 32
    %v247 = vpop.permute.xlu0 %246
    %248 = vrot.lane.b32.xlu0 %v243, 32
    %v249 = vpop.permute.xlu0 %248
    %v252 = vadd.f32 %v232, %v247
    %v253 = vadd.f32 %v233, %v249
    %v254 = vtanh.pop %v252
    %v255 = vtanh.pop %v253
    %258 = vrot.lane.b32.xlu0 %v254, 32
    %v259 = vpop.permute.xlu0 %258
    %260 = vrot.lane.b32.xlu0 %v255, 32
    %v261 = vpop.permute.xlu0 %260
    %v264 = vmul.f32 %v227, %v259
    %v265 = vmul.f32 %v229, %v261
    %v266 = vpack.c.bf16 %v264, %v264
    %v267 = vpack.c.bf16 %v265, %v265
    %v270 = vunpack.c.l.b16 %v266
    %v271 = vunpack.c.l.b16 %v267
    %v272 = vrot.slane %v271, 7
    %vm273 = vcmask 1041409
    %v274 = vsel %vm273, %v272, %v270
    %v275 = vpack.c.b16 %v274, %v274
    %276 = vrot.lane.b32.xlu0 %v275, 64
    %v277 = vpop.permute.xlu0 %276
    %v279 = vsel %vm168, %v277, 0
    %281 = vmatprep.subr.bf16.mxu0 0
    %282 = vmatpush1.bf16.msra.mxu0 0
    %283 = vmatprep.subr.bf16.mxu0 0
    %284 = vmatpush1.bf16.msra.mxu0 0
    %285 = vmatprep.subr.bf16.mxu0 0
    %286 = vmatpush1.bf16.msra.mxu0 0
    %287 = vmatprep.subr.bf16.mxu0 0
    %288 = vmatpush1.bf16.msra.mxu0 0
    %289 = vmatprep.subr.bf16.mxu0 0
    %290 = vmatpush1.bf16.msra.mxu0 0
    %291 = vmatprep.subr.bf16.mxu0 0
    %292 = vmatpush1.bf16.msra.mxu0 0
    %293 = vmatprep.subr.bf16.mxu0 0
    %294 = vmatpush1.bf16.msra.mxu0 %v165
    %295 = vmatprep.subr.bf16.mxu0 0
    %296 = vmatpush1.bf16.msra.mxu0 %v164
    %297 = vmatprep.subr.bf16.mxu0 0
    %298 = vmatpush2.bf16.msra.mxu0 0
    %299 = vmatprep.subr.bf16.mxu0 0
    %300 = vmatpush2.bf16.msra.mxu0 0
    %301 = vmatprep.subr.bf16.mxu0 0
    %302 = vmatpush2.bf16.msra.mxu0 0
    %303 = vmatprep.subr.bf16.mxu0 0
    %304 = vmatpush2.bf16.msra.mxu0 0
    %305 = vmatprep.subr.bf16.mxu0 0
    %306 = vmatpush2.bf16.msra.mxu0 0
    %307 = vmatprep.subr.bf16.mxu0 0
    %308 = vmatpush2.bf16.msra.mxu0 0
    %309 = vmatprep.subr.bf16.mxu0 0
    %310 = vmatpush2.bf16.msra.mxu0 0
    %311 = vmatprep.subr.bf16.mxu0 0
    %312 = vmatpush2.bf16.msra.mxu0 0
    %313 = vmatprep.mubr.bf16.mxu0 0
    %314 = vmatmul.mubr.bf16.gmra.mxu0 %v279
    %v315 = vpop.f32.mrf.mxu0
    %v316 = vadd.f32 0.0, %v315
    %v317 = vpop.f32.mrf.mxu0
    %v318 = vpop.f32.mrf.mxu0
    %v319 = vpop.f32.mrf.mxu0
    %320 = vdwg.mxu0
    %v322 = vrot.slane %v316, 7
    %v325 = vadd.f32 %v154, %v322
    %v326 = vadd.f32 %v155, %v316
    %v327 = vxor.u32 %v325, 2147483648
    %v328 = vxor.u32 %v326, 2147483648
    %v329 = vmul.f32 %v327, 1.442695
    %v330 = vpow.pop %v329
    %v331 = vmul.f32 %v328, 1.442695
    %v332 = vpow.pop %v331
    %v333 = vadd.f32 %v330, 1.0
    %v334 = vadd.f32 %v332, 1.0
    %v335 = vrcp.pop %v333
    %v336 = vmul.f32 1.0, %v335
    %v337 = vrcp.pop %v334
    %v338 = vmul.f32 1.0, %v337
    %v339 = vtanh.pop %v325
    %v340 = vtanh.pop %v326
    %v343 = vrot.slane %v252, 7
    %v344 = vrot.slane %v253, 7
    %v347 = vmul.f32 %v336, %v343
    %v348 = vmul.f32 %v338, %v344
    %351 = vrot.lane.b32.xlu0 %v339, 32
    %v352 = vpop.permute.xlu0 %351
    %353 = vrot.lane.b32.xlu0 %v340, 32
    %v354 = vpop.permute.xlu0 %353
    %v357 = vmul.f32 %v336, %v352
    %v358 = vmul.f32 %v338, %v354
    %361 = vrot.lane.b32.xlu0 %v357, 32
    %v362 = vpop.permute.xlu0 %361
    %363 = vrot.lane.b32.xlu0 %v358, 32
    %v364 = vpop.permute.xlu0 %363
    %v367 = vadd.f32 %v347, %v362
    %v368 = vadd.f32 %v348, %v364
    %v369 = vtanh.pop %v367
    %v370 = vtanh.pop %v368
    %373 = vrot.lane.b32.xlu0 %v369, 32
    %v374 = vpop.permute.xlu0 %373
    %375 = vrot.lane.b32.xlu0 %v370, 32
    %v376 = vpop.permute.xlu0 %375
    %v379 = vmul.f32 %v336, %v374
    %v380 = vmul.f32 %v338, %v376
    %v381 = vpack.c.bf16 %v379, %v379
    %v382 = vpack.c.bf16 %v380, %v380
    %v384 = vlaneseq
    %v385 = vshrl.u32 %v384, 7
    %v386 = vsub.s32 0, %v385
    %v387 = vrot.slane %v95, %v386
    %v393 = vunpack.c.l.b16 %v82
    %v394 = vunpack.c.l.b16 %v83
    %v395 = vunpack.c.l.b16 %v84
    %v396 = vunpack.c.l.b16 %v85
    %v397 = vpack.c.b16 %v394, %v393
    %v398 = vpack.c.b16 %v396, %v395
    %401 = vmatprep.subr.bf16.mxu0 0
    %402 = vmatpush1.bf16.msra.mxu0 0
    %403 = vmatprep.subr.bf16.mxu0 0
    %404 = vmatpush1.bf16.msra.mxu0 0
    %405 = vmatprep.subr.bf16.mxu0 0
    %406 = vmatpush1.bf16.msra.mxu0 0
    %407 = vmatprep.subr.bf16.mxu0 0
    %408 = vmatpush1.bf16.msra.mxu0 0
    %409 = vmatprep.subr.bf16.mxu0 0
    %410 = vmatpush1.bf16.msra.mxu0 0
    %411 = vmatprep.subr.bf16.mxu0 0
    %412 = vmatpush1.bf16.msra.mxu0 0
    %413 = vmatprep.subr.bf16.mxu0 0
    %414 = vmatpush1.bf16.msra.mxu0 %v398
    %415 = vmatprep.subr.bf16.mxu0 0
    %416 = vmatpush1.bf16.msra.mxu0 %v397
    %417 = vmatprep.subr.bf16.mxu0 0
    %418 = vmatpush2.bf16.msra.mxu0 0
    %419 = vmatprep.subr.bf16.mxu0 0
    %420 = vmatpush2.bf16.msra.mxu0 0
    %421 = vmatprep.subr.bf16.mxu0 0
    %422 = vmatpush2.bf16.msra.mxu0 0
    %423 = vmatprep.subr.bf16.mxu0 0
    %424 = vmatpush2.bf16.msra.mxu0 0
    %425 = vmatprep.subr.bf16.mxu0 0
    %426 = vmatpush2.bf16.msra.mxu0 0
    %427 = vmatprep.subr.bf16.mxu0 0
    %428 = vmatpush2.bf16.msra.mxu0 0
    %429 = vmatprep.subr.bf16.mxu0 0
    %430 = vmatpush2.bf16.msra.mxu0 0
    %431 = vmatprep.subr.bf16.mxu0 0
    %432 = vmatpush2.bf16.msra.mxu0 0
    %433 = vmatprep.mubr.bf16.mxu0 0
    %434 = vmatmul.mubr.bf16.gmra.mxu0 %v279
    %v435 = vpop.f32.mrf.mxu0
    %v436 = vadd.f32 %v387, %v435
    %v437 = vpop.f32.mrf.mxu0
    %v438 = vpop.f32.mrf.mxu0
    %v439 = vpop.f32.mrf.mxu0
    %440 = vdwg.mxu0
    %v445 = vunpack.c.l.b16 %v90
    %v446 = vunpack.c.l.b16 %v91
    %v447 = vunpack.c.l.b16 %v92
    %v448 = vunpack.c.l.b16 %v93
    %v449 = vpack.c.b16 %v446, %v445
    %v450 = vpack.c.b16 %v448, %v447
    %453 = vmatprep.subr.bf16.mxu0 0
    %454 = vmatpush1.bf16.msra.mxu0 0
    %455 = vmatprep.subr.bf16.mxu0 0
    %456 = vmatpush1.bf16.msra.mxu0 0
    %457 = vmatprep.subr.bf16.mxu0 0
    %458 = vmatpush1.bf16.msra.mxu0 0
    %459 = vmatprep.subr.bf16.mxu0 0
    %460 = vmatpush1.bf16.msra.mxu0 0
    %461 = vmatprep.subr.bf16.mxu0 0
    %462 = vmatpush1.bf16.msra.mxu0 0
    %463 = vmatprep.subr.bf16.mxu0 0
    %464 = vmatpush1.bf16.msra.mxu0 0
    %465 = vmatprep.subr.bf16.mxu0 0
    %466 = vmatpush1.bf16.msra.mxu0 %v450
    %467 = vmatprep.subr.bf16.mxu0 0
    %468 = vmatpush1.bf16.msra.mxu0 %v449
    %469 = vmatprep.subr.bf16.mxu0 0
    %470 = vmatpush2.bf16.msra.mxu0 0
    %471 = vmatprep.subr.bf16.mxu0 0
    %472 = vmatpush2.bf16.msra.mxu0 0
    %473 = vmatprep.subr.bf16.mxu0 0
    %474 = vmatpush2.bf16.msra.mxu0 0
    %475 = vmatprep.subr.bf16.mxu0 0
    %476 = vmatpush2.bf16.msra.mxu0 0
    %477 = vmatprep.subr.bf16.mxu0 0
    %478 = vmatpush2.bf16.msra.mxu0 0
    %479 = vmatprep.subr.bf16.mxu0 0
    %480 = vmatpush2.bf16.msra.mxu0 0
    %481 = vmatprep.subr.bf16.mxu0 0
    %482 = vmatpush2.bf16.msra.mxu0 0
    %483 = vmatprep.subr.bf16.mxu0 0
    %484 = vmatpush2.bf16.msra.mxu0 0
    %485 = vmatprep.mubr.bf16.mxu0 0
    %486 = vmatmul.mubr.bf16.gmra.mxu0 %v170
    %v487 = vpop.f32.mrf.mxu0
    %v488 = vadd.f32 0.0, %v487
    %v489 = vpop.f32.mrf.mxu0
    %v490 = vpop.f32.mrf.mxu0
    %v491 = vpop.f32.mrf.mxu0
    %492 = vdwg.mxu0
    %v493 = vadd.f32 %v436, %v488
    %v494 = vxor.u32 %v493, 2147483648
    %v495 = vmul.f32 %v494, 1.442695
    %v496 = vpow.pop %v495
    %v497 = vadd.f32 %v496, 1.0
    %v498 = vrcp.pop %v497
    %v499 = vmul.f32 1.0, %v498
    %v500 = vtanh.pop %v493
    %v501 = vmul.f32 %v499, 0.0
    %503 = vrot.lane.b32.xlu0 %v500, 32
    %v504 = vpop.permute.xlu0 %503
    %v506 = vmul.f32 %v499, %v504
    %508 = vrot.lane.b32.xlu0 %v506, 32
    %v509 = vpop.permute.xlu0 %508
    %v511 = vadd.f32 %v501, %v509
    %v512 = vtanh.pop %v511
    %514 = vrot.lane.b32.xlu0 %v512, 32
    %v515 = vpop.permute.xlu0 %514
    %v517 = vmul.f32 %v499, %v515
    %v518 = vpack.c.bf16 %v517, %v517
    %v521 = vunpack.c.l.b16 %v381
    %v522 = vunpack.c.l.b16 %v382
    %v523 = vrot.slane %v521, 1
    %v524 = vsel %vm273, %v522, %v523
    %v525 = vpack.c.b16 %v524, %v524
    %526 = vrot.lane.b32.xlu0 %v525, 64
    %v527 = vpop.permute.xlu0 %526
    %v529 = vsel %vm168, %v527, 0
    %531 = vmatprep.subr.bf16.mxu0 0
    %532 = vmatpush1.bf16.msra.mxu0 0
    %533 = vmatprep.subr.bf16.mxu0 0
    %534 = vmatpush1.bf16.msra.mxu0 0
    %535 = vmatprep.subr.bf16.mxu0 0
    %536 = vmatpush1.bf16.msra.mxu0 0
    %537 = vmatprep.subr.bf16.mxu0 0
    %538 = vmatpush1.bf16.msra.mxu0 0
    %539 = vmatprep.subr.bf16.mxu0 0
    %540 = vmatpush1.bf16.msra.mxu0 0
    %541 = vmatprep.subr.bf16.mxu0 0
    %542 = vmatpush1.bf16.msra.mxu0 0
    %543 = vmatprep.subr.bf16.mxu0 0
    %544 = vmatpush1.bf16.msra.mxu0 %v165
    %545 = vmatprep.subr.bf16.mxu0 0
    %546 = vmatpush1.bf16.msra.mxu0 %v164
    %547 = vmatprep.subr.bf16.mxu0 0
    %548 = vmatpush2.bf16.msra.mxu0 0
    %549 = vmatprep.subr.bf16.mxu0 0
    %550 = vmatpush2.bf16.msra.mxu0 0
    %551 = vmatprep.subr.bf16.mxu0 0
    %552 = vmatpush2.bf16.msra.mxu0 0
    %553 = vmatprep.subr.bf16.mxu0 0
    %554 = vmatpush2.bf16.msra.mxu0 0
    %555 = vmatprep.subr.bf16.mxu0 0
    %556 = vmatpush2.bf16.msra.mxu0 0
    %557 = vmatprep.subr.bf16.mxu0 0
    %558 = vmatpush2.bf16.msra.mxu0 0
    %559 = vmatprep.subr.bf16.mxu0 0
    %560 = vmatpush2.bf16.msra.mxu0 0
    %561 = vmatprep.subr.bf16.mxu0 0
    %562 = vmatpush2.bf16.msra.mxu0 0
    %563 = vmatprep.mubr.bf16.mxu0 0
    %564 = vmatmul.mubr.bf16.gmra.mxu0 %v529
    %v565 = vpop.f32.mrf.mxu0
    %v566 = vadd.f32 0.0, %v565
    %v567 = vpop.f32.mrf.mxu0
    %v568 = vpop.f32.mrf.mxu0
    %v569 = vpop.f32.mrf.mxu0
    %570 = vdwg.mxu0
    %v572 = vrot.slane %v566, 6
    %v573 = vrot.slane %v566, 7
    %v576 = vadd.f32 %v154, %v572
    %v577 = vadd.f32 %v155, %v573
    %v578 = vxor.u32 %v576, 2147483648
    %v579 = vxor.u32 %v577, 2147483648
    %v580 = vmul.f32 %v578, 1.442695
    %v581 = vpow.pop %v580
    %v582 = vmul.f32 %v579, 1.442695
    %v583 = vpow.pop %v582
    %v584 = vadd.f32 %v581, 1.0
    %v585 = vadd.f32 %v583, 1.0
    %v586 = vrcp.pop %v584
    %v587 = vmul.f32 1.0, %v586
    %v588 = vrcp.pop %v585
    %v589 = vmul.f32 1.0, %v588
    %v590 = vtanh.pop %v576
    %v591 = vtanh.pop %v577
    %v594 = vrot.slane %v367, 7
    %v595 = vrot.slane %v368, 7
    %v598 = vmul.f32 %v587, %v594
    %v599 = vmul.f32 %v589, %v595
    %602 = vrot.lane.b32.xlu0 %v590, 32
    %v603 = vpop.permute.xlu0 %602
    %604 = vrot.lane.b32.xlu0 %v591, 32
    %v605 = vpop.permute.xlu0 %604
    %v608 = vmul.f32 %v587, %v603
    %v609 = vmul.f32 %v589, %v605
    %612 = vrot.lane.b32.xlu0 %v608, 32
    %v613 = vpop.permute.xlu0 %612
    %614 = vrot.lane.b32.xlu0 %v609, 32
    %v615 = vpop.permute.xlu0 %614
    %v618 = vadd.f32 %v598, %v613
    %v619 = vadd.f32 %v599, %v615
    %v620 = vtanh.pop %v618
    %v621 = vtanh.pop %v619
    %624 = vrot.lane.b32.xlu0 %v620, 32
    %v625 = vpop.permute.xlu0 %624
    %626 = vrot.lane.b32.xlu0 %v621, 32
    %v627 = vpop.permute.xlu0 %626
    %v630 = vmul.f32 %v587, %v625
    %v631 = vmul.f32 %v589, %v627
    %v632 = vpack.c.bf16 %v630, %v630
    %v633 = vpack.c.bf16 %v631, %v631
    %634 = vmatprep.subr.bf16.mxu0 0
    %635 = vmatpush1.bf16.msra.mxu0 0
    %636 = vmatprep.subr.bf16.mxu0 0
    %637 = vmatpush1.bf16.msra.mxu0 0
    %638 = vmatprep.subr.bf16.mxu0 0
    %639 = vmatpush1.bf16.msra.mxu0 0
    %640 = vmatprep.subr.bf16.mxu0 0
    %641 = vmatpush1.bf16.msra.mxu0 0
    %642 = vmatprep.subr.bf16.mxu0 0
    %643 = vmatpush1.bf16.msra.mxu0 0
    %644 = vmatprep.subr.bf16.mxu0 0
    %645 = vmatpush1.bf16.msra.mxu0 0
    %646 = vmatprep.subr.bf16.mxu0 0
    %647 = vmatpush1.bf16.msra.mxu0 %v398
    %648 = vmatprep.subr.bf16.mxu0 0
    %649 = vmatpush1.bf16.msra.mxu0 %v397
    %650 = vmatprep.subr.bf16.mxu0 0
    %651 = vmatpush2.bf16.msra.mxu0 0
    %652 = vmatprep.subr.bf16.mxu0 0
    %653 = vmatpush2.bf16.msra.mxu0 0
    %654 = vmatprep.subr.bf16.mxu0 0
    %655 = vmatpush2.bf16.msra.mxu0 0
    %656 = vmatprep.subr.bf16.mxu0 0
    %657 = vmatpush2.bf16.msra.mxu0 0
    %658 = vmatprep.subr.bf16.mxu0 0
    %659 = vmatpush2.bf16.msra.mxu0 0
    %660 = vmatprep.subr.bf16.mxu0 0
    %661 = vmatpush2.bf16.msra.mxu0 0
    %662 = vmatprep.subr.bf16.mxu0 0
    %663 = vmatpush2.bf16.msra.mxu0 0
    %664 = vmatprep.subr.bf16.mxu0 0
    %665 = vmatpush2.bf16.msra.mxu0 0
    %666 = vmatprep.mubr.bf16.mxu0 0
    %667 = vmatmul.mubr.bf16.gmra.mxu0 %v529
    %v668 = vpop.f32.mrf.mxu0
    %v669 = vadd.f32 %v387, %v668
    %v670 = vpop.f32.mrf.mxu0
    %v671 = vpop.f32.mrf.mxu0
    %v672 = vpop.f32.mrf.mxu0
    %673 = vdwg.mxu0
    %675 = vrot.lane.b32.xlu0 %v518, 64
    %v676 = vpop.permute.xlu0 %675
    %v678 = vsel %vm168, %v676, 0
    %680 = vmatprep.subr.bf16.mxu0 0
    %681 = vmatpush1.bf16.msra.mxu0 0
    %682 = vmatprep.subr.bf16.mxu0 0
    %683 = vmatpush1.bf16.msra.mxu0 0
    %684 = vmatprep.subr.bf16.mxu0 0
    %685 = vmatpush1.bf16.msra.mxu0 0
    %686 = vmatprep.subr.bf16.mxu0 0
    %687 = vmatpush1.bf16.msra.mxu0 0
    %688 = vmatprep.subr.bf16.mxu0 0
    %689 = vmatpush1.bf16.msra.mxu0 0
    %690 = vmatprep.subr.bf16.mxu0 0
    %691 = vmatpush1.bf16.msra.mxu0 0
    %692 = vmatprep.subr.bf16.mxu0 0
    %693 = vmatpush1.bf16.msra.mxu0 %v450
    %694 = vmatprep.subr.bf16.mxu0 0
    %695 = vmatpush1.bf16.msra.mxu0 %v449
    %696 = vmatprep.subr.bf16.mxu0 0
    %697 = vmatpush2.bf16.msra.mxu0 0
    %698 = vmatprep.subr.bf16.mxu0 0
    %699 = vmatpush2.bf16.msra.mxu0 0
    %700 = vmatprep.subr.bf16.mxu0 0
    %701 = vmatpush2.bf16.msra.mxu0 0
    %702 = vmatprep.subr.bf16.mxu0 0
    %703 = vmatpush2.bf16.msra.mxu0 0
    %704 = vmatprep.subr.bf16.mxu0 0
    %705 = vmatpush2.bf16.msra.mxu0 0
    %706 = vmatprep.subr.bf16.mxu0 0
    %707 = vmatpush2.bf16.msra.mxu0 0
    %708 = vmatprep.subr.bf16.mxu0 0
    %709 = vmatpush2.bf16.msra.mxu0 0
    %710 = vmatprep.subr.bf16.mxu0 0
    %711 = vmatpush2.bf16.msra.mxu0 0
    %712 = vmatprep.mubr.bf16.mxu0 0
    %713 = vmatmul.mubr.bf16.gmra.mxu0 %v678
    %v714 = vpop.f32.mrf.mxu0
    %v715 = vadd.f32 0.0, %v714
    %v716 = vpop.f32.mrf.mxu0
    %v717 = vpop.f32.mrf.mxu0
    %v718 = vpop.f32.mrf.mxu0
    %719 = vdwg.mxu0
    %v720 = vadd.f32 %v669, %v715
    %v721 = vxor.u32 %v720, 2147483648
    %v722 = vmul.f32 %v721, 1.442695
    %v723 = vpow.pop %v722
    %v724 = vadd.f32 %v723, 1.0
    %v725 = vrcp.pop %v724
    %v726 = vmul.f32 1.0, %v725
    %v727 = vtanh.pop %v720
    %v728 = vmul.f32 %v726, %v511
    %730 = vrot.lane.b32.xlu0 %v727, 32
    %v731 = vpop.permute.xlu0 %730
    %v733 = vmul.f32 %v726, %v731
    %735 = vrot.lane.b32.xlu0 %v733, 32
    %v736 = vpop.permute.xlu0 %735
    %v738 = vadd.f32 %v728, %v736
    %v739 = vtanh.pop %v738
    %741 = vrot.lane.b32.xlu0 %v739, 32
    %v742 = vpop.permute.xlu0 %741
    %v744 = vmul.f32 %v726, %v742
    %v745 = vpack.c.bf16 %v744, %v744
    %v748 = vunpack.c.l.b16 %v632
    %v749 = vunpack.c.l.b16 %v633
    %v750 = vrot.slane %v748, 2
    %v751 = vrot.slane %v749, 1
    %v752 = vsel %vm273, %v751, %v750
    %v753 = vpack.c.b16 %v752, %v752
    %754 = vrot.lane.b32.xlu0 %v753, 64
    %v755 = vpop.permute.xlu0 %754
    %v757 = vsel %vm168, %v755, 0
    %759 = vmatprep.subr.bf16.mxu0 0
    %760 = vmatpush1.bf16.msra.mxu0 0
    %761 = vmatprep.subr.bf16.mxu0 0
    %762 = vmatpush1.bf16.msra.mxu0 0
    %763 = vmatprep.subr.bf16.mxu0 0
    %764 = vmatpush1.bf16.msra.mxu0 0
    %765 = vmatprep.subr.bf16.mxu0 0
    %766 = vmatpush1.bf16.msra.mxu0 0
    %767 = vmatprep.subr.bf16.mxu0 0
    %768 = vmatpush1.bf16.msra.mxu0 0
    %769 = vmatprep.subr.bf16.mxu0 0
    %770 = vmatpush1.bf16.msra.mxu0 0
    %771 = vmatprep.subr.bf16.mxu0 0
    %772 = vmatpush1.bf16.msra.mxu0 %v165
    %773 = vmatprep.subr.bf16.mxu0 0
    %774 = vmatpush1.bf16.msra.mxu0 %v164
    %775 = vmatprep.subr.bf16.mxu0 0
    %776 = vmatpush2.bf16.msra.mxu0 0
    %777 = vmatprep.subr.bf16.mxu0 0
    %778 = vmatpush2.bf16.msra.mxu0 0
    %779 = vmatprep.subr.bf16.mxu0 0
    %780 = vmatpush2.bf16.msra.mxu0 0
    %781 = vmatprep.subr.bf16.mxu0 0
    %782 = vmatpush2.bf16.msra.mxu0 0
    %783 = vmatprep.subr.bf16.mxu0 0
    %784 = vmatpush2.bf16.msra.mxu0 0
    %785 = vmatprep.subr.bf16.mxu0 0
    %786 = vmatpush2.bf16.msra.mxu0 0
    %787 = vmatprep.subr.bf16.mxu0 0
    %788 = vmatpush2.bf16.msra.mxu0 0
    %789 = vmatprep.subr.bf16.mxu0 0
    %790 = vmatpush2.bf16.msra.mxu0 0
    %791 = vmatprep.mubr.bf16.mxu0 0
    %792 = vmatmul.mubr.bf16.gmra.mxu0 %v757
    %v793 = vpop.f32.mrf.mxu0
    %v794 = vadd.f32 0.0, %v793
    %v795 = vpop.f32.mrf.mxu0
    %v796 = vpop.f32.mrf.mxu0
    %v797 = vpop.f32.mrf.mxu0
    %798 = vdwg.mxu0
    %v800 = vrot.slane %v794, 5
    %v801 = vrot.slane %v794, 6
    %v804 = vadd.f32 %v154, %v800
    %v805 = vadd.f32 %v155, %v801
    %v806 = vxor.u32 %v804, 2147483648
    %v807 = vxor.u32 %v805, 2147483648
    %v808 = vmul.f32 %v806, 1.442695
    %v809 = vpow.pop %v808
    %v810 = vmul.f32 %v807, 1.442695
    %v811 = vpow.pop %v810
    %v812 = vadd.f32 %v809, 1.0
    %v813 = vadd.f32 %v811, 1.0
    %v814 = vrcp.pop %v812
    %v815 = vmul.f32 1.0, %v814
    %v816 = vrcp.pop %v813
    %v817 = vmul.f32 1.0, %v816
    %v818 = vtanh.pop %v804
    %v819 = vtanh.pop %v805
    %v822 = vrot.slane %v618, 7
    %v823 = vrot.slane %v619, 7
    %v826 = vmul.f32 %v815, %v822
    %v827 = vmul.f32 %v817, %v823
    %830 = vrot.lane.b32.xlu0 %v818, 32
    %v831 = vpop.permute.xlu0 %830
    %832 = vrot.lane.b32.xlu0 %v819, 32
    %v833 = vpop.permute.xlu0 %832
    %v836 = vmul.f32 %v815, %v831
    %v837 = vmul.f32 %v817, %v833
    %840 = vrot.lane.b32.xlu0 %v836, 32
    %v841 = vpop.permute.xlu0 %840
    %842 = vrot.lane.b32.xlu0 %v837, 32
    %v843 = vpop.permute.xlu0 %842
    %v846 = vadd.f32 %v826, %v841
    %v847 = vadd.f32 %v827, %v843
    %v848 = vtanh.pop %v846
    %v849 = vtanh.pop %v847
    %852 = vrot.lane.b32.xlu0 %v848, 32
    %v853 = vpop.permute.xlu0 %852
    %854 = vrot.lane.b32.xlu0 %v849, 32
    %v855 = vpop.permute.xlu0 %854
    %v858 = vmul.f32 %v815, %v853
    %v859 = vmul.f32 %v817, %v855
    %v860 = vpack.c.bf16 %v858, %v858
    %v861 = vpack.c.bf16 %v859, %v859
    %862 = vmatprep.subr.bf16.mxu0 0
    %863 = vmatpush1.bf16.msra.mxu0 0
    %864 = vmatprep.subr.bf16.mxu0 0
    %865 = vmatpush1.bf16.msra.mxu0 0
    %866 = vmatprep.subr.bf16.mxu0 0
    %867 = vmatpush1.bf16.msra.mxu0 0
    %868 = vmatprep.subr.bf16.mxu0 0
    %869 = vmatpush1.bf16.msra.mxu0 0
    %870 = vmatprep.subr.bf16.mxu0 0
    %871 = vmatpush1.bf16.msra.mxu0 0
    %872 = vmatprep.subr.bf16.mxu0 0
    %873 = vmatpush1.bf16.msra.mxu0 0
    %874 = vmatprep.subr.bf16.mxu0 0
    %875 = vmatpush1.bf16.msra.mxu0 %v398
    %876 = vmatprep.subr.bf16.mxu0 0
    %877 = vmatpush1.bf16.msra.mxu0 %v397
    %878 = vmatprep.subr.bf16.mxu0 0
    %879 = vmatpush2.bf16.msra.mxu0 0
    %880 = vmatprep.subr.bf16.mxu0 0
    %881 = vmatpush2.bf16.msra.mxu0 0
    %882 = vmatprep.subr.bf16.mxu0 0
    %883 = vmatpush2.bf16.msra.mxu0 0
    %884 = vmatprep.subr.bf16.mxu0 0
    %885 = vmatpush2.bf16.msra.mxu0 0
    %886 = vmatprep.subr.bf16.mxu0 0
    %887 = vmatpush2.bf16.msra.mxu0 0
    %888 = vmatprep.subr.bf16.mxu0 0
    %889 = vmatpush2.bf16.msra.mxu0 0
    %890 = vmatprep.subr.bf16.mxu0 0
    %891 = vmatpush2.bf16.msra.mxu0 0
    %892 = vmatprep.subr.bf16.mxu0 0
    %893 = vmatpush2.bf16.msra.mxu0 0
    %894 = vmatprep.mubr.bf16.mxu0 0
    %895 = vmatmul.mubr.bf16.gmra.mxu0 %v757
    %v896 = vpop.f32.mrf.mxu0
    %v897 = vadd.f32 %v387, %v896
    %v898 = vpop.f32.mrf.mxu0
    %v899 = vpop.f32.mrf.mxu0
    %v900 = vpop.f32.mrf.mxu0
    %901 = vdwg.mxu0
    %903 = vrot.lane.b32.xlu0 %v745, 64
    %v904 = vpop.permute.xlu0 %903
    %v906 = vsel %vm168, %v904, 0
    %908 = vmatprep.subr.bf16.mxu0 0
    %909 = vmatpush1.bf16.msra.mxu0 0
    %910 = vmatprep.subr.bf16.mxu0 0
    %911 = vmatpush1.bf16.msra.mxu0 0
    %912 = vmatprep.subr.bf16.mxu0 0
    %913 = vmatpush1.bf16.msra.mxu0 0
    %914 = vmatprep.subr.bf16.mxu0 0
    %915 = vmatpush1.bf16.msra.mxu0 0
    %916 = vmatprep.subr.bf16.mxu0 0
    %917 = vmatpush1.bf16.msra.mxu0 0
    %918 = vmatprep.subr.bf16.mxu0 0
    %919 = vmatpush1.bf16.msra.mxu0 0
    %920 = vmatprep.subr.bf16.mxu0 0
    %921 = vmatpush1.bf16.msra.mxu0 %v450
    %922 = vmatprep.subr.bf16.mxu0 0
    %923 = vmatpush1.bf16.msra.mxu0 %v449
    %924 = vmatprep.subr.bf16.mxu0 0
    %925 = vmatpush2.bf16.msra.mxu0 0
    %926 = vmatprep.subr.bf16.mxu0 0
    %927 = vmatpush2.bf16.msra.mxu0 0
    %928 = vmatprep.subr.bf16.mxu0 0
    %929 = vmatpush2.bf16.msra.mxu0 0
    %930 = vmatprep.subr.bf16.mxu0 0
    %931 = vmatpush2.bf16.msra.mxu0 0
    %932 = vmatprep.subr.bf16.mxu0 0
    %933 = vmatpush2.bf16.msra.mxu0 0
    %934 = vmatprep.subr.bf16.mxu0 0
    %935 = vmatpush2.bf16.msra.mxu0 0
    %936 = vmatprep.subr.bf16.mxu0 0
    %937 = vmatpush2.bf16.msra.mxu0 0
    %938 = vmatprep.subr.bf16.mxu0 0
    %939 = vmatpush2.bf16.msra.mxu0 0
    %940 = vmatprep.mubr.bf16.mxu0 0
    %941 = vmatmul.mubr.bf16.gmra.mxu0 %v906
    %v942 = vpop.f32.mrf.mxu0
    %v943 = vadd.f32 0.0, %v942
    %v944 = vpop.f32.mrf.mxu0
    %v945 = vpop.f32.mrf.mxu0
    %v946 = vpop.f32.mrf.mxu0
    %947 = vdwg.mxu0
    %v948 = vadd.f32 %v897, %v943
    %v949 = vxor.u32 %v948, 2147483648
    %v950 = vmul.f32 %v949, 1.442695
    %v951 = vpow.pop %v950
    %v952 = vadd.f32 %v951, 1.0
    %v953 = vrcp.pop %v952
    %v954 = vmul.f32 1.0, %v953
    %v955 = vtanh.pop %v948
    %v956 = vmul.f32 %v954, %v738
    %958 = vrot.lane.b32.xlu0 %v955, 32
    %v959 = vpop.permute.xlu0 %958
    %v961 = vmul.f32 %v954, %v959
    %963 = vrot.lane.b32.xlu0 %v961, 32
    %v964 = vpop.permute.xlu0 %963
    %v966 = vadd.f32 %v956, %v964
    %v967 = vtanh.pop %v966
    %969 = vrot.lane.b32.xlu0 %v967, 32
    %v970 = vpop.permute.xlu0 %969
    %v972 = vmul.f32 %v954, %v970
    %v973 = vpack.c.bf16 %v972, %v972
    %v976 = vunpack.c.l.b16 %v860
    %v977 = vunpack.c.l.b16 %v861
    %v978 = vrot.slane %v976, 3
    %v979 = vrot.slane %v977, 2
    %v980 = vsel %vm273, %v979, %v978
    %v981 = vpack.c.b16 %v980, %v980
    %982 = vrot.lane.b32.xlu0 %v981, 64
    %v983 = vpop.permute.xlu0 %982
    %v985 = vsel %vm168, %v983, 0
    %987 = vmatprep.subr.bf16.mxu0 0
    %988 = vmatpush1.bf16.msra.mxu0 0
    %989 = vmatprep.subr.bf16.mxu0 0
    %990 = vmatpush1.bf16.msra.mxu0 0
    %991 = vmatprep.subr.bf16.mxu0 0
    %992 = vmatpush1.bf16.msra.mxu0 0
    %993 = vmatprep.subr.bf16.mxu0 0
    %994 = vmatpush1.bf16.msra.mxu0 0
    %995 = vmatprep.subr.bf16.mxu0 0
    %996 = vmatpush1.bf16.msra.mxu0 0
    %997 = vmatprep.subr.bf16.mxu0 0
    %998 = vmatpush1.bf16.msra.mxu0 0
    %999 = vmatprep.subr.bf16.mxu0 0
    %1000 = vmatpush1.bf16.msra.mxu0 %v165
    %1001 = vmatprep.subr.bf16.mxu0 0
    %1002 = vmatpush1.bf16.msra.mxu0 %v164
    %1003 = vmatprep.subr.bf16.mxu0 0
    %1004 = vmatpush2.bf16.msra.mxu0 0
    %1005 = vmatprep.subr.bf16.mxu0 0
    %1006 = vmatpush2.bf16.msra.mxu0 0
    %1007 = vmatprep.subr.bf16.mxu0 0
    %1008 = vmatpush2.bf16.msra.mxu0 0
    %1009 = vmatprep.subr.bf16.mxu0 0
    %1010 = vmatpush2.bf16.msra.mxu0 0
    %1011 = vmatprep.subr.bf16.mxu0 0
    %1012 = vmatpush2.bf16.msra.mxu0 0
    %1013 = vmatprep.subr.bf16.mxu0 0
    %1014 = vmatpush2.bf16.msra.mxu0 0
    %1015 = vmatprep.subr.bf16.mxu0 0
    %1016 = vmatpush2.bf16.msra.mxu0 0
    %1017 = vmatprep.subr.bf16.mxu0 0
    %1018 = vmatpush2.bf16.msra.mxu0 0
    %1019 = vmatprep.mubr.bf16.mxu0 0
    %1020 = vmatmul.mubr.bf16.gmra.mxu0 %v985
    %v1021 = vpop.f32.mrf.mxu0
    %v1022 = vadd.f32 0.0, %v1021
    %v1023 = vpop.f32.mrf.mxu0
    %v1024 = vpop.f32.mrf.mxu0
    %v1025 = vpop.f32.mrf.mxu0
    %1026 = vdwg.mxu0
    %v1028 = vrot.slane %v1022, 4
    %v1029 = vrot.slane %v1022, 5
    %v1032 = vadd.f32 %v154, %v1028
    %v1033 = vadd.f32 %v155, %v1029
    %v1034 = vxor.u32 %v1032, 2147483648
    %v1035 = vxor.u32 %v1033, 2147483648
    %v1036 = vmul.f32 %v1034, 1.442695
    %v1037 = vpow.pop %v1036
    %v1038 = vmul.f32 %v1035, 1.442695
    %v1039 = vpow.pop %v1038
    %v1040 = vadd.f32 %v1037, 1.0
    %v1041 = vadd.f32 %v1039, 1.0
    %v1042 = vrcp.pop %v1040
    %v1043 = vmul.f32 1.0, %v1042
    %v1044 = vrcp.pop %v1041
    %v1045 = vmul.f32 1.0, %v1044
    %v1046 = vtanh.pop %v1032
    %v1047 = vtanh.pop %v1033
    %v1050 = vrot.slane %v846, 7
    %v1051 = vrot.slane %v847, 7
    %v1054 = vmul.f32 %v1043, %v1050
    %v1055 = vmul.f32 %v1045, %v1051
    %1058 = vrot.lane.b32.xlu0 %v1046, 32
    %v1059 = vpop.permute.xlu0 %1058
    %1060 = vrot.lane.b32.xlu0 %v1047, 32
    %v1061 = vpop.permute.xlu0 %1060
    %v1064 = vmul.f32 %v1043, %v1059
    %v1065 = vmul.f32 %v1045, %v1061
    %1068 = vrot.lane.b32.xlu0 %v1064, 32
    %v1069 = vpop.permute.xlu0 %1068
    %1070 = vrot.lane.b32.xlu0 %v1065, 32
    %v1071 = vpop.permute.xlu0 %1070
    %v1074 = vadd.f32 %v1054, %v1069
    %v1075 = vadd.f32 %v1055, %v1071
    %v1076 = vtanh.pop %v1074
    %v1077 = vtanh.pop %v1075
    %1080 = vrot.lane.b32.xlu0 %v1076, 32
    %v1081 = vpop.permute.xlu0 %1080
    %1082 = vrot.lane.b32.xlu0 %v1077, 32
    %v1083 = vpop.permute.xlu0 %1082
    %v1086 = vmul.f32 %v1043, %v1081
    %v1087 = vmul.f32 %v1045, %v1083
    %v1088 = vpack.c.bf16 %v1086, %v1086
    %v1089 = vpack.c.bf16 %v1087, %v1087
    %1090 = vmatprep.subr.bf16.mxu0 0
    %1091 = vmatpush1.bf16.msra.mxu0 0
    %1092 = vmatprep.subr.bf16.mxu0 0
    %1093 = vmatpush1.bf16.msra.mxu0 0
    %1094 = vmatprep.subr.bf16.mxu0 0
    %1095 = vmatpush1.bf16.msra.mxu0 0
    %1096 = vmatprep.subr.bf16.mxu0 0
    %1097 = vmatpush1.bf16.msra.mxu0 0
    %1098 = vmatprep.subr.bf16.mxu0 0
    %1099 = vmatpush1.bf16.msra.mxu0 0
    %1100 = vmatprep.subr.bf16.mxu0 0
    %1101 = vmatpush1.bf16.msra.mxu0 0
    %1102 = vmatprep.subr.bf16.mxu0 0
    %1103 = vmatpush1.bf16.msra.mxu0 %v398
    %1104 = vmatprep.subr.bf16.mxu0 0
    %1105 = vmatpush1.bf16.msra.mxu0 %v397
    %1106 = vmatprep.subr.bf16.mxu0 0
    %1107 = vmatpush2.bf16.msra.mxu0 0
    %1108 = vmatprep.subr.bf16.mxu0 0
    %1109 = vmatpush2.bf16.msra.mxu0 0
    %1110 = vmatprep.subr.bf16.mxu0 0
    %1111 = vmatpush2.bf16.msra.mxu0 0
    %1112 = vmatprep.subr.bf16.mxu0 0
    %1113 = vmatpush2.bf16.msra.mxu0 0
    %1114 = vmatprep.subr.bf16.mxu0 0
    %1115 = vmatpush2.bf16.msra.mxu0 0
    %1116 = vmatprep.subr.bf16.mxu0 0
    %1117 = vmatpush2.bf16.msra.mxu0 0
    %1118 = vmatprep.subr.bf16.mxu0 0
    %1119 = vmatpush2.bf16.msra.mxu0 0
    %1120 = vmatprep.subr.bf16.mxu0 0
    %1121 = vmatpush2.bf16.msra.mxu0 0
    %1122 = vmatprep.mubr.bf16.mxu0 0
    %1123 = vmatmul.mubr.bf16.gmra.mxu0 %v985
    %v1124 = vpop.f32.mrf.mxu0
    %v1125 = vadd.f32 %v387, %v1124
    %v1126 = vpop.f32.mrf.mxu0
    %v1127 = vpop.f32.mrf.mxu0
    %v1128 = vpop.f32.mrf.mxu0
    %1129 = vdwg.mxu0
    %1131 = vrot.lane.b32.xlu0 %v973, 64
    %v1132 = vpop.permute.xlu0 %1131
    %v1134 = vsel %vm168, %v1132, 0
    %1136 = vmatprep.subr.bf16.mxu0 0
    %1137 = vmatpush1.bf16.msra.mxu0 0
    %1138 = vmatprep.subr.bf16.mxu0 0
    %1139 = vmatpush1.bf16.msra.mxu0 0
    %1140 = vmatprep.subr.bf16.mxu0 0
    %1141 = vmatpush1.bf16.msra.mxu0 0
    %1142 = vmatprep.subr.bf16.mxu0 0
    %1143 = vmatpush1.bf16.msra.mxu0 0
    %1144 = vmatprep.subr.bf16.mxu0 0
    %1145 = vmatpush1.bf16.msra.mxu0 0
    %1146 = vmatprep.subr.bf16.mxu0 0
    %1147 = vmatpush1.bf16.msra.mxu0 0
    %1148 = vmatprep.subr.bf16.mxu0 0
    %1149 = vmatpush1.bf16.msra.mxu0 %v450
    %1150 = vmatprep.subr.bf16.mxu0 0
    %1151 = vmatpush1.bf16.msra.mxu0 %v449
    %1152 = vmatprep.subr.bf16.mxu0 0
    %1153 = vmatpush2.bf16.msra.mxu0 0
    %1154 = vmatprep.subr.bf16.mxu0 0
    %1155 = vmatpush2.bf16.msra.mxu0 0
    %1156 = vmatprep.subr.bf16.mxu0 0
    %1157 = vmatpush2.bf16.msra.mxu0 0
    %1158 = vmatprep.subr.bf16.mxu0 0
    %1159 = vmatpush2.bf16.msra.mxu0 0
    %1160 = vmatprep.subr.bf16.mxu0 0
    %1161 = vmatpush2.bf16.msra.mxu0 0
    %1162 = vmatprep.subr.bf16.mxu0 0
    %1163 = vmatpush2.bf16.msra.mxu0 0
    %1164 = vmatprep.subr.bf16.mxu0 0
    %1165 = vmatpush2.bf16.msra.mxu0 0
    %1166 = vmatprep.subr.bf16.mxu0 0
    %1167 = vmatpush2.bf16.msra.mxu0 0
    %1168 = vmatprep.mubr.bf16.mxu0 0
    %1169 = vmatmul.mubr.bf16.gmra.mxu0 %v1134
    %v1170 = vpop.f32.mrf.mxu0
    %v1171 = vadd.f32 0.0, %v1170
    %v1172 = vpop.f32.mrf.mxu0
    %v1173 = vpop.f32.mrf.mxu0
    %v1174 = vpop.f32.mrf.mxu0
    %1175 = vdwg.mxu0
    %v1176 = vadd.f32 %v1125, %v1171
    %v1177 = vxor.u32 %v1176, 2147483648
    %v1178 = vmul.f32 %v1177, 1.442695
    %v1179 = vpow.pop %v1178
    %v1180 = vadd.f32 %v1179, 1.0
    %v1181 = vrcp.pop %v1180
    %v1182 = vmul.f32 1.0, %v1181
    %v1183 = vtanh.pop %v1176
    %v1184 = vmul.f32 %v1182, %v966
    %1186 = vrot.lane.b32.xlu0 %v1183, 32
    %v1187 = vpop.permute.xlu0 %1186
    %v1189 = vmul.f32 %v1182, %v1187
    %1191 = vrot.lane.b32.xlu0 %v1189, 32
    %v1192 = vpop.permute.xlu0 %1191
    %v1194 = vadd.f32 %v1184, %v1192
    %v1195 = vtanh.pop %v1194
    %1197 = vrot.lane.b32.xlu0 %v1195, 32
    %v1198 = vpop.permute.xlu0 %1197
    %v1200 = vmul.f32 %v1182, %v1198
    %v1201 = vpack.c.bf16 %v1200, %v1200
    %v1204 = vunpack.c.l.b16 %v1088
    %v1205 = vunpack.c.l.b16 %v1089
    %v1206 = vrot.slane %v1204, 4
    %v1207 = vrot.slane %v1205, 3
    %v1208 = vsel %vm273, %v1207, %v1206
    %v1209 = vpack.c.b16 %v1208, %v1208
    %1210 = vrot.lane.b32.xlu0 %v1209, 64
    %v1211 = vpop.permute.xlu0 %1210
    %v1213 = vsel %vm168, %v1211, 0
    %1215 = vmatprep.subr.bf16.mxu0 0
    %1216 = vmatpush1.bf16.msra.mxu0 0
    %1217 = vmatprep.subr.bf16.mxu0 0
    %1218 = vmatpush1.bf16.msra.mxu0 0
    %1219 = vmatprep.subr.bf16.mxu0 0
    %1220 = vmatpush1.bf16.msra.mxu0 0
    %1221 = vmatprep.subr.bf16.mxu0 0
    %1222 = vmatpush1.bf16.msra.mxu0 0
    %1223 = vmatprep.subr.bf16.mxu0 0
    %1224 = vmatpush1.bf16.msra.mxu0 0
    %1225 = vmatprep.subr.bf16.mxu0 0
    %1226 = vmatpush1.bf16.msra.mxu0 0
    %1227 = vmatprep.subr.bf16.mxu0 0
    %1228 = vmatpush1.bf16.msra.mxu0 %v165
    %1229 = vmatprep.subr.bf16.mxu0 0
    %1230 = vmatpush1.bf16.msra.mxu0 %v164
    %1231 = vmatprep.subr.bf16.mxu0 0
    %1232 = vmatpush2.bf16.msra.mxu0 0
    %1233 = vmatprep.subr.bf16.mxu0 0
    %1234 = vmatpush2.bf16.msra.mxu0 0
    %1235 = vmatprep.subr.bf16.mxu0 0
    %1236 = vmatpush2.bf16.msra.mxu0 0
    %1237 = vmatprep.subr.bf16.mxu0 0
    %1238 = vmatpush2.bf16.msra.mxu0 0
    %1239 = vmatprep.subr.bf16.mxu0 0
    %1240 = vmatpush2.bf16.msra.mxu0 0
    %1241 = vmatprep.subr.bf16.mxu0 0
    %1242 = vmatpush2.bf16.msra.mxu0 0
    %1243 = vmatprep.subr.bf16.mxu0 0
    %1244 = vmatpush2.bf16.msra.mxu0 0
    %1245 = vmatprep.subr.bf16.mxu0 0
    %1246 = vmatpush2.bf16.msra.mxu0 0
    %1247 = vmatprep.mubr.bf16.mxu0 0
    %1248 = vmatmul.mubr.bf16.gmra.mxu0 %v1213
    %v1249 = vpop.f32.mrf.mxu0
    %v1250 = vadd.f32 0.0, %v1249
    %v1251 = vpop.f32.mrf.mxu0
    %v1252 = vpop.f32.mrf.mxu0
    %v1253 = vpop.f32.mrf.mxu0
    %1254 = vdwg.mxu0
    %v1256 = vrot.slane %v1250, 3
    %v1257 = vrot.slane %v1250, 4
    %v1260 = vadd.f32 %v154, %v1256
    %v1261 = vadd.f32 %v155, %v1257
    %v1262 = vxor.u32 %v1260, 2147483648
    %v1263 = vxor.u32 %v1261, 2147483648
    %v1264 = vmul.f32 %v1262, 1.442695
    %v1265 = vpow.pop %v1264
    %v1266 = vmul.f32 %v1263, 1.442695
    %v1267 = vpow.pop %v1266
    %v1268 = vadd.f32 %v1265, 1.0
    %v1269 = vadd.f32 %v1267, 1.0
    %v1270 = vrcp.pop %v1268
    %v1271 = vmul.f32 1.0, %v1270
    %v1272 = vrcp.pop %v1269
    %v1273 = vmul.f32 1.0, %v1272
    %v1274 = vtanh.pop %v1260
    %v1275 = vtanh.pop %v1261
    %v1278 = vrot.slane %v1074, 7
    %v1279 = vrot.slane %v1075, 7
    %v1282 = vmul.f32 %v1271, %v1278
    %v1283 = vmul.f32 %v1273, %v1279
    %1286 = vrot.lane.b32.xlu0 %v1274, 32
    %v1287 = vpop.permute.xlu0 %1286
    %1288 = vrot.lane.b32.xlu0 %v1275, 32
    %v1289 = vpop.permute.xlu0 %1288
    %v1292 = vmul.f32 %v1271, %v1287
    %v1293 = vmul.f32 %v1273, %v1289
    %1296 = vrot.lane.b32.xlu0 %v1292, 32
    %v1297 = vpop.permute.xlu0 %1296
    %1298 = vrot.lane.b32.xlu0 %v1293, 32
    %v1299 = vpop.permute.xlu0 %1298
    %v1302 = vadd.f32 %v1282, %v1297
    %v1303 = vadd.f32 %v1283, %v1299
    %v1304 = vtanh.pop %v1302
    %v1305 = vtanh.pop %v1303
    %1308 = vrot.lane.b32.xlu0 %v1304, 32
    %v1309 = vpop.permute.xlu0 %1308
    %1310 = vrot.lane.b32.xlu0 %v1305, 32
    %v1311 = vpop.permute.xlu0 %1310
    %v1314 = vmul.f32 %v1271, %v1309
    %v1315 = vmul.f32 %v1273, %v1311
    %v1316 = vpack.c.bf16 %v1314, %v1314
    %v1317 = vpack.c.bf16 %v1315, %v1315
    %1318 = vmatprep.subr.bf16.mxu0 0
    %1319 = vmatpush1.bf16.msra.mxu0 0
    %1320 = vmatprep.subr.bf16.mxu0 0
    %1321 = vmatpush1.bf16.msra.mxu0 0
    %1322 = vmatprep.subr.bf16.mxu0 0
    %1323 = vmatpush1.bf16.msra.mxu0 0
    %1324 = vmatprep.subr.bf16.mxu0 0
    %1325 = vmatpush1.bf16.msra.mxu0 0
    %1326 = vmatprep.subr.bf16.mxu0 0
    %1327 = vmatpush1.bf16.msra.mxu0 0
    %1328 = vmatprep.subr.bf16.mxu0 0
    %1329 = vmatpush1.bf16.msra.mxu0 0
    %1330 = vmatprep.subr.bf16.mxu0 0
    %1331 = vmatpush1.bf16.msra.mxu0 %v398
    %1332 = vmatprep.subr.bf16.mxu0 0
    %1333 = vmatpush1.bf16.msra.mxu0 %v397
    %1334 = vmatprep.subr.bf16.mxu0 0
    %1335 = vmatpush2.bf16.msra.mxu0 0
    %1336 = vmatprep.subr.bf16.mxu0 0
    %1337 = vmatpush2.bf16.msra.mxu0 0
    %1338 = vmatprep.subr.bf16.mxu0 0
    %1339 = vmatpush2.bf16.msra.mxu0 0
    %1340 = vmatprep.subr.bf16.mxu0 0
    %1341 = vmatpush2.bf16.msra.mxu0 0
    %1342 = vmatprep.subr.bf16.mxu0 0
    %1343 = vmatpush2.bf16.msra.mxu0 0
    %1344 = vmatprep.subr.bf16.mxu0 0
    %1345 = vmatpush2.bf16.msra.mxu0 0
    %1346 = vmatprep.subr.bf16.mxu0 0
    %1347 = vmatpush2.bf16.msra.mxu0 0
    %1348 = vmatprep.subr.bf16.mxu0 0
    %1349 = vmatpush2.bf16.msra.mxu0 0
    %1350 = vmatprep.mubr.bf16.mxu0 0
    %1351 = vmatmul.mubr.bf16.gmra.mxu0 %v1213
    %v1352 = vpop.f32.mrf.mxu0
    %v1353 = vadd.f32 %v387, %v1352
    %v1354 = vpop.f32.mrf.mxu0
    %v1355 = vpop.f32.mrf.mxu0
    %v1356 = vpop.f32.mrf.mxu0
    %1357 = vdwg.mxu0
    %1359 = vrot.lane.b32.xlu0 %v1201, 64
    %v1360 = vpop.permute.xlu0 %1359
    %v1362 = vsel %vm168, %v1360, 0
    %1364 = vmatprep.subr.bf16.mxu0 0
    %1365 = vmatpush1.bf16.msra.mxu0 0
    %1366 = vmatprep.subr.bf16.mxu0 0
    %1367 = vmatpush1.bf16.msra.mxu0 0
    %1368 = vmatprep.subr.bf16.mxu0 0
    %1369 = vmatpush1.bf16.msra.mxu0 0
    %1370 = vmatprep.subr.bf16.mxu0 0
    %1371 = vmatpush1.bf16.msra.mxu0 0
    %1372 = vmatprep.subr.bf16.mxu0 0
    %1373 = vmatpush1.bf16.msra.mxu0 0
    %1374 = vmatprep.subr.bf16.mxu0 0
    %1375 = vmatpush1.bf16.msra.mxu0 0
    %1376 = vmatprep.subr.bf16.mxu0 0
    %1377 = vmatpush1.bf16.msra.mxu0 %v450
    %1378 = vmatprep.subr.bf16.mxu0 0
    %1379 = vmatpush1.bf16.msra.mxu0 %v449
    %1380 = vmatprep.subr.bf16.mxu0 0
    %1381 = vmatpush2.bf16.msra.mxu0 0
    %1382 = vmatprep.subr.bf16.mxu0 0
    %1383 = vmatpush2.bf16.msra.mxu0 0
    %1384 = vmatprep.subr.bf16.mxu0 0
    %1385 = vmatpush2.bf16.msra.mxu0 0
    %1386 = vmatprep.subr.bf16.mxu0 0
    %1387 = vmatpush2.bf16.msra.mxu0 0
    %1388 = vmatprep.subr.bf16.mxu0 0
    %1389 = vmatpush2.bf16.msra.mxu0 0
    %1390 = vmatprep.subr.bf16.mxu0 0
    %1391 = vmatpush2.bf16.msra.mxu0 0
    %1392 = vmatprep.subr.bf16.mxu0 0
    %1393 = vmatpush2.bf16.msra.mxu0 0
    %1394 = vmatprep.subr.bf16.mxu0 0
    %1395 = vmatpush2.bf16.msra.mxu0 0
    %1396 = vmatprep.mubr.bf16.mxu0 0
    %1397 = vmatmul.mubr.bf16.gmra.mxu0 %v1362
    %v1398 = vpop.f32.mrf.mxu0
    %v1399 = vadd.f32 0.0, %v1398
    %v1400 = vpop.f32.mrf.mxu0
    %v1401 = vpop.f32.mrf.mxu0
    %v1402 = vpop.f32.mrf.mxu0
    %1403 = vdwg.mxu0
    %v1404 = vadd.f32 %v1353, %v1399
    %v1405 = vxor.u32 %v1404, 2147483648
    %v1406 = vmul.f32 %v1405, 1.442695
    %v1407 = vpow.pop %v1406
    %v1408 = vadd.f32 %v1407, 1.0
    %v1409 = vrcp.pop %v1408
    %v1410 = vmul.f32 1.0, %v1409
    %v1411 = vtanh.pop %v1404
    %v1412 = vmul.f32 %v1410, %v1194
    %1414 = vrot.lane.b32.xlu0 %v1411, 32
    %v1415 = vpop.permute.xlu0 %1414
    %v1417 = vmul.f32 %v1410, %v1415
    %1419 = vrot.lane.b32.xlu0 %v1417, 32
    %v1420 = vpop.permute.xlu0 %1419
    %v1422 = vadd.f32 %v1412, %v1420
    %v1423 = vtanh.pop %v1422
    %1425 = vrot.lane.b32.xlu0 %v1423, 32
    %v1426 = vpop.permute.xlu0 %1425
    %v1428 = vmul.f32 %v1410, %v1426
    %v1429 = vpack.c.bf16 %v1428, %v1428
    %v1432 = vunpack.c.l.b16 %v1316
    %v1433 = vunpack.c.l.b16 %v1317
    %v1434 = vrot.slane %v1432, 5
    %v1435 = vrot.slane %v1433, 4
    %v1436 = vsel %vm273, %v1435, %v1434
    %v1437 = vpack.c.b16 %v1436, %v1436
    %1438 = vrot.lane.b32.xlu0 %v1437, 64
    %v1439 = vpop.permute.xlu0 %1438
    %v1441 = vsel %vm168, %v1439, 0
    %1443 = vmatprep.subr.bf16.mxu0 0
    %1444 = vmatpush1.bf16.msra.mxu0 0
    %1445 = vmatprep.subr.bf16.mxu0 0
    %1446 = vmatpush1.bf16.msra.mxu0 0
    %1447 = vmatprep.subr.bf16.mxu0 0
    %1448 = vmatpush1.bf16.msra.mxu0 0
    %1449 = vmatprep.subr.bf16.mxu0 0
    %1450 = vmatpush1.bf16.msra.mxu0 0
    %1451 = vmatprep.subr.bf16.mxu0 0
    %1452 = vmatpush1.bf16.msra.mxu0 0
    %1453 = vmatprep.subr.bf16.mxu0 0
    %1454 = vmatpush1.bf16.msra.mxu0 0
    %1455 = vmatprep.subr.bf16.mxu0 0
    %1456 = vmatpush1.bf16.msra.mxu0 %v165
    %1457 = vmatprep.subr.bf16.mxu0 0
    %1458 = vmatpush1.bf16.msra.mxu0 %v164
    %1459 = vmatprep.subr.bf16.mxu0 0
    %1460 = vmatpush2.bf16.msra.mxu0 0
    %1461 = vmatprep.subr.bf16.mxu0 0
    %1462 = vmatpush2.bf16.msra.mxu0 0
    %1463 = vmatprep.subr.bf16.mxu0 0
    %1464 = vmatpush2.bf16.msra.mxu0 0
    %1465 = vmatprep.subr.bf16.mxu0 0
    %1466 = vmatpush2.bf16.msra.mxu0 0
    %1467 = vmatprep.subr.bf16.mxu0 0
    %1468 = vmatpush2.bf16.msra.mxu0 0
    %1469 = vmatprep.subr.bf16.mxu0 0
    %1470 = vmatpush2.bf16.msra.mxu0 0
    %1471 = vmatprep.subr.bf16.mxu0 0
    %1472 = vmatpush2.bf16.msra.mxu0 0
    %1473 = vmatprep.subr.bf16.mxu0 0
    %1474 = vmatpush2.bf16.msra.mxu0 0
    %1475 = vmatprep.mubr.bf16.mxu0 0
    %1476 = vmatmul.mubr.bf16.gmra.mxu0 %v1441
    %v1477 = vpop.f32.mrf.mxu0
    %v1478 = vadd.f32 0.0, %v1477
    %v1479 = vpop.f32.mrf.mxu0
    %v1480 = vpop.f32.mrf.mxu0
    %v1481 = vpop.f32.mrf.mxu0
    %1482 = vdwg.mxu0
    %v1484 = vrot.slane %v1478, 2
    %v1485 = vrot.slane %v1478, 3
    %v1488 = vadd.f32 %v154, %v1484
    %v1489 = vadd.f32 %v155, %v1485
    %v1490 = vxor.u32 %v1488, 2147483648
    %v1491 = vxor.u32 %v1489, 2147483648
    %v1492 = vmul.f32 %v1490, 1.442695
    %v1493 = vpow.pop %v1492
    %v1494 = vmul.f32 %v1491, 1.442695
    %v1495 = vpow.pop %v1494
    %v1496 = vadd.f32 %v1493, 1.0
    %v1497 = vadd.f32 %v1495, 1.0
    %v1498 = vrcp.pop %v1496
    %v1499 = vmul.f32 1.0, %v1498
    %v1500 = vrcp.pop %v1497
    %v1501 = vmul.f32 1.0, %v1500
    %v1502 = vtanh.pop %v1488
    %v1503 = vtanh.pop %v1489
    %v1506 = vrot.slane %v1302, 7
    %v1507 = vrot.slane %v1303, 7
    %v1510 = vmul.f32 %v1499, %v1506
    %v1511 = vmul.f32 %v1501, %v1507
    %1514 = vrot.lane.b32.xlu0 %v1502, 32
    %v1515 = vpop.permute.xlu0 %1514
    %1516 = vrot.lane.b32.xlu0 %v1503, 32
    %v1517 = vpop.permute.xlu0 %1516
    %v1520 = vmul.f32 %v1499, %v1515
    %v1521 = vmul.f32 %v1501, %v1517
    %1524 = vrot.lane.b32.xlu0 %v1520, 32
    %v1525 = vpop.permute.xlu0 %1524
    %1526 = vrot.lane.b32.xlu0 %v1521, 32
    %v1527 = vpop.permute.xlu0 %1526
    %v1530 = vadd.f32 %v1510, %v1525
    %v1531 = vadd.f32 %v1511, %v1527
    %v1532 = vtanh.pop %v1530
    %v1533 = vtanh.pop %v1531
    %1536 = vrot.lane.b32.xlu0 %v1532, 32
    %v1537 = vpop.permute.xlu0 %1536
    %1538 = vrot.lane.b32.xlu0 %v1533, 32
    %v1539 = vpop.permute.xlu0 %1538
    %v1542 = vmul.f32 %v1499, %v1537
    %v1543 = vmul.f32 %v1501, %v1539
    %v1544 = vpack.c.bf16 %v1542, %v1542
    %v1545 = vpack.c.bf16 %v1543, %v1543
    %1546 = vmatprep.subr.bf16.mxu0 0
    %1547 = vmatpush1.bf16.msra.mxu0 0
    %1548 = vmatprep.subr.bf16.mxu0 0
    %1549 = vmatpush1.bf16.msra.mxu0 0
    %1550 = vmatprep.subr.bf16.mxu0 0
    %1551 = vmatpush1.bf16.msra.mxu0 0
    %1552 = vmatprep.subr.bf16.mxu0 0
    %1553 = vmatpush1.bf16.msra.mxu0 0
    %1554 = vmatprep.subr.bf16.mxu0 0
    %1555 = vmatpush1.bf16.msra.mxu0 0
    %1556 = vmatprep.subr.bf16.mxu0 0
    %1557 = vmatpush1.bf16.msra.mxu0 0
    %1558 = vmatprep.subr.bf16.mxu0 0
    %1559 = vmatpush1.bf16.msra.mxu0 %v398
    %1560 = vmatprep.subr.bf16.mxu0 0
    %1561 = vmatpush1.bf16.msra.mxu0 %v397
    %1562 = vmatprep.subr.bf16.mxu0 0
    %1563 = vmatpush2.bf16.msra.mxu0 0
    %1564 = vmatprep.subr.bf16.mxu0 0
    %1565 = vmatpush2.bf16.msra.mxu0 0
    %1566 = vmatprep.subr.bf16.mxu0 0
    %1567 = vmatpush2.bf16.msra.mxu0 0
    %1568 = vmatprep.subr.bf16.mxu0 0
    %1569 = vmatpush2.bf16.msra.mxu0 0
    %1570 = vmatprep.subr.bf16.mxu0 0
    %1571 = vmatpush2.bf16.msra.mxu0 0
    %1572 = vmatprep.subr.bf16.mxu0 0
    %1573 = vmatpush2.bf16.msra.mxu0 0
    %1574 = vmatprep.subr.bf16.mxu0 0
    %1575 = vmatpush2.bf16.msra.mxu0 0
    %1576 = vmatprep.subr.bf16.mxu0 0
    %1577 = vmatpush2.bf16.msra.mxu0 0
    %1578 = vmatprep.mubr.bf16.mxu0 0
    %1579 = vmatmul.mubr.bf16.gmra.mxu0 %v1441
    %v1580 = vpop.f32.mrf.mxu0
    %v1581 = vadd.f32 %v387, %v1580
    %v1582 = vpop.f32.mrf.mxu0
    %v1583 = vpop.f32.mrf.mxu0
    %v1584 = vpop.f32.mrf.mxu0
    %1585 = vdwg.mxu0
    %1587 = vrot.lane.b32.xlu0 %v1429, 64
    %v1588 = vpop.permute.xlu0 %1587
    %v1590 = vsel %vm168, %v1588, 0
    %1592 = vmatprep.subr.bf16.mxu0 0
    %1593 = vmatpush1.bf16.msra.mxu0 0
    %1594 = vmatprep.subr.bf16.mxu0 0
    %1595 = vmatpush1.bf16.msra.mxu0 0
    %1596 = vmatprep.subr.bf16.mxu0 0
    %1597 = vmatpush1.bf16.msra.mxu0 0
    %1598 = vmatprep.subr.bf16.mxu0 0
    %1599 = vmatpush1.bf16.msra.mxu0 0
    %1600 = vmatprep.subr.bf16.mxu0 0
    %1601 = vmatpush1.bf16.msra.mxu0 0
    %1602 = vmatprep.subr.bf16.mxu0 0
    %1603 = vmatpush1.bf16.msra.mxu0 0
    %1604 = vmatprep.subr.bf16.mxu0 0
    %1605 = vmatpush1.bf16.msra.mxu0 %v450
    %1606 = vmatprep.subr.bf16.mxu0 0
    %1607 = vmatpush1.bf16.msra.mxu0 %v449
    %1608 = vmatprep.subr.bf16.mxu0 0
    %1609 = vmatpush2.bf16.msra.mxu0 0
    %1610 = vmatprep.subr.bf16.mxu0 0
    %1611 = vmatpush2.bf16.msra.mxu0 0
    %1612 = vmatprep.subr.bf16.mxu0 0
    %1613 = vmatpush2.bf16.msra.mxu0 0
    %1614 = vmatprep.subr.bf16.mxu0 0
    %1615 = vmatpush2.bf16.msra.mxu0 0
    %1616 = vmatprep.subr.bf16.mxu0 0
    %1617 = vmatpush2.bf16.msra.mxu0 0
    %1618 = vmatprep.subr.bf16.mxu0 0
    %1619 = vmatpush2.bf16.msra.mxu0 0
    %1620 = vmatprep.subr.bf16.mxu0 0
    %1621 = vmatpush2.bf16.msra.mxu0 0
    %1622 = vmatprep.subr.bf16.mxu0 0
    %1623 = vmatpush2.bf16.msra.mxu0 0
    %1624 = vmatprep.mubr.bf16.mxu0 0
    %1625 = vmatmul.mubr.bf16.gmra.mxu0 %v1590
    %v1626 = vpop.f32.mrf.mxu0
    %v1627 = vadd.f32 0.0, %v1626
    %v1628 = vpop.f32.mrf.mxu0
    %v1629 = vpop.f32.mrf.mxu0
    %v1630 = vpop.f32.mrf.mxu0
    %1631 = vdwg.mxu0
    %v1632 = vadd.f32 %v1581, %v1627
    %v1633 = vxor.u32 %v1632, 2147483648
    %v1634 = vmul.f32 %v1633, 1.442695
    %v1635 = vpow.pop %v1634
    %v1636 = vadd.f32 %v1635, 1.0
    %v1637 = vrcp.pop %v1636
    %v1638 = vmul.f32 1.0, %v1637
    %v1639 = vtanh.pop %v1632
    %v1640 = vmul.f32 %v1638, %v1422
    %1642 = vrot.lane.b32.xlu0 %v1639, 32
    %v1643 = vpop.permute.xlu0 %1642
    %v1645 = vmul.f32 %v1638, %v1643
    %1647 = vrot.lane.b32.xlu0 %v1645, 32
    %v1648 = vpop.permute.xlu0 %1647
    %v1650 = vadd.f32 %v1640, %v1648
    %v1651 = vtanh.pop %v1650
    %1653 = vrot.lane.b32.xlu0 %v1651, 32
    %v1654 = vpop.permute.xlu0 %1653
    %v1656 = vmul.f32 %v1638, %v1654
    %v1657 = vpack.c.bf16 %v1656, %v1656
    %v1660 = vunpack.c.l.b16 %v1544
    %v1661 = vunpack.c.l.b16 %v1545
    %v1662 = vrot.slane %v1660, 6
    %v1663 = vrot.slane %v1661, 5
    %v1664 = vsel %vm273, %v1663, %v1662
    %v1665 = vpack.c.b16 %v1664, %v1664
    %1666 = vrot.lane.b32.xlu0 %v1665, 64
    %v1667 = vpop.permute.xlu0 %1666
    %v1669 = vsel %vm168, %v1667, 0
    %1671 = vmatprep.subr.bf16.mxu0 0
    %1672 = vmatpush1.bf16.msra.mxu0 0
    %1673 = vmatprep.subr.bf16.mxu0 0
    %1674 = vmatpush1.bf16.msra.mxu0 0
    %1675 = vmatprep.subr.bf16.mxu0 0
    %1676 = vmatpush1.bf16.msra.mxu0 0
    %1677 = vmatprep.subr.bf16.mxu0 0
    %1678 = vmatpush1.bf16.msra.mxu0 0
    %1679 = vmatprep.subr.bf16.mxu0 0
    %1680 = vmatpush1.bf16.msra.mxu0 0
    %1681 = vmatprep.subr.bf16.mxu0 0
    %1682 = vmatpush1.bf16.msra.mxu0 0
    %1683 = vmatprep.subr.bf16.mxu0 0
    %1684 = vmatpush1.bf16.msra.mxu0 %v165
    %1685 = vmatprep.subr.bf16.mxu0 0
    %1686 = vmatpush1.bf16.msra.mxu0 %v164
    %1687 = vmatprep.subr.bf16.mxu0 0
    %1688 = vmatpush2.bf16.msra.mxu0 0
    %1689 = vmatprep.subr.bf16.mxu0 0
    %1690 = vmatpush2.bf16.msra.mxu0 0
    %1691 = vmatprep.subr.bf16.mxu0 0
    %1692 = vmatpush2.bf16.msra.mxu0 0
    %1693 = vmatprep.subr.bf16.mxu0 0
    %1694 = vmatpush2.bf16.msra.mxu0 0
    %1695 = vmatprep.subr.bf16.mxu0 0
    %1696 = vmatpush2.bf16.msra.mxu0 0
    %1697 = vmatprep.subr.bf16.mxu0 0
    %1698 = vmatpush2.bf16.msra.mxu0 0
    %1699 = vmatprep.subr.bf16.mxu0 0
    %1700 = vmatpush2.bf16.msra.mxu0 0
    %1701 = vmatprep.subr.bf16.mxu0 0
    %1702 = vmatpush2.bf16.msra.mxu0 0
    %1703 = vmatprep.mubr.bf16.mxu0 0
    %1704 = vmatmul.mubr.bf16.gmra.mxu0 %v1669
    %v1705 = vpop.f32.mrf.mxu0
    %v1706 = vadd.f32 0.0, %v1705
    %v1707 = vpop.f32.mrf.mxu0
    %v1708 = vpop.f32.mrf.mxu0
    %v1709 = vpop.f32.mrf.mxu0
    %1710 = vdwg.mxu0
    %v1712 = vrot.slane %v1706, 1
    %v1713 = vrot.slane %v1706, 2
    %v1716 = vadd.f32 %v154, %v1712
    %v1717 = vadd.f32 %v155, %v1713
    %v1718 = vxor.u32 %v1716, 2147483648
    %v1719 = vxor.u32 %v1717, 2147483648
    %v1720 = vmul.f32 %v1718, 1.442695
    %v1721 = vpow.pop %v1720
    %v1722 = vmul.f32 %v1719, 1.442695
    %v1723 = vpow.pop %v1722
    %v1724 = vadd.f32 %v1721, 1.0
    %v1725 = vadd.f32 %v1723, 1.0
    %v1726 = vrcp.pop %v1724
    %v1727 = vmul.f32 1.0, %v1726
    %v1728 = vrcp.pop %v1725
    %v1729 = vmul.f32 1.0, %v1728
    %v1730 = vtanh.pop %v1716
    %v1731 = vtanh.pop %v1717
    %v1734 = vrot.slane %v1530, 7
    %v1735 = vrot.slane %v1531, 7
    %v1738 = vmul.f32 %v1727, %v1734
    %v1739 = vmul.f32 %v1729, %v1735
    %1742 = vrot.lane.b32.xlu0 %v1730, 32
    %v1743 = vpop.permute.xlu0 %1742
    %1744 = vrot.lane.b32.xlu0 %v1731, 32
    %v1745 = vpop.permute.xlu0 %1744
    %v1748 = vmul.f32 %v1727, %v1743
    %v1749 = vmul.f32 %v1729, %v1745
    %1752 = vrot.lane.b32.xlu0 %v1748, 32
    %v1753 = vpop.permute.xlu0 %1752
    %1754 = vrot.lane.b32.xlu0 %v1749, 32
    %v1755 = vpop.permute.xlu0 %1754
    %v1758 = vadd.f32 %v1738, %v1753
    %v1759 = vadd.f32 %v1739, %v1755
    %v1760 = vtanh.pop %v1758
    %v1761 = vtanh.pop %v1759
    %1764 = vrot.lane.b32.xlu0 %v1760, 32
    %v1765 = vpop.permute.xlu0 %1764
    %1766 = vrot.lane.b32.xlu0 %v1761, 32
    %v1767 = vpop.permute.xlu0 %1766
    %v1770 = vmul.f32 %v1727, %v1765
    %v1771 = vmul.f32 %v1729, %v1767
    %v1772 = vpack.c.bf16 %v1770, %v1770
    %v1773 = vpack.c.bf16 %v1771, %v1771
    %1774 = vmatprep.subr.bf16.mxu0 0
    %1775 = vmatpush1.bf16.msra.mxu0 0
    %1776 = vmatprep.subr.bf16.mxu0 0
    %1777 = vmatpush1.bf16.msra.mxu0 0
    %1778 = vmatprep.subr.bf16.mxu0 0
    %1779 = vmatpush1.bf16.msra.mxu0 0
    %1780 = vmatprep.subr.bf16.mxu0 0
    %1781 = vmatpush1.bf16.msra.mxu0 0
    %1782 = vmatprep.subr.bf16.mxu0 0
    %1783 = vmatpush1.bf16.msra.mxu0 0
    %1784 = vmatprep.subr.bf16.mxu0 0
    %1785 = vmatpush1.bf16.msra.mxu0 0
    %1786 = vmatprep.subr.bf16.mxu0 0
    %1787 = vmatpush1.bf16.msra.mxu0 %v398
    %1788 = vmatprep.subr.bf16.mxu0 0
    %1789 = vmatpush1.bf16.msra.mxu0 %v397
    %1790 = vmatprep.subr.bf16.mxu0 0
    %1791 = vmatpush2.bf16.msra.mxu0 0
    %1792 = vmatprep.subr.bf16.mxu0 0
    %1793 = vmatpush2.bf16.msra.mxu0 0
    %1794 = vmatprep.subr.bf16.mxu0 0
    %1795 = vmatpush2.bf16.msra.mxu0 0
    %1796 = vmatprep.subr.bf16.mxu0 0
    %1797 = vmatpush2.bf16.msra.mxu0 0
    %1798 = vmatprep.subr.bf16.mxu0 0
    %1799 = vmatpush2.bf16.msra.mxu0 0
    %1800 = vmatprep.subr.bf16.mxu0 0
    %1801 = vmatpush2.bf16.msra.mxu0 0
    %1802 = vmatprep.subr.bf16.mxu0 0
    %1803 = vmatpush2.bf16.msra.mxu0 0
    %1804 = vmatprep.subr.bf16.mxu0 0
    %1805 = vmatpush2.bf16.msra.mxu0 0
    %1806 = vmatprep.mubr.bf16.mxu0 0
    %1807 = vmatmul.mubr.bf16.gmra.mxu0 %v1669
    %v1808 = vpop.f32.mrf.mxu0
    %v1809 = vadd.f32 %v387, %v1808
    %v1810 = vpop.f32.mrf.mxu0
    %v1811 = vpop.f32.mrf.mxu0
    %v1812 = vpop.f32.mrf.mxu0
    %1813 = vdwg.mxu0
    %1815 = vrot.lane.b32.xlu0 %v1657, 64
    %v1816 = vpop.permute.xlu0 %1815
    %v1818 = vsel %vm168, %v1816, 0
    %1820 = vmatprep.subr.bf16.mxu0 0
    %1821 = vmatpush1.bf16.msra.mxu0 0
    %1822 = vmatprep.subr.bf16.mxu0 0
    %1823 = vmatpush1.bf16.msra.mxu0 0
    %1824 = vmatprep.subr.bf16.mxu0 0
    %1825 = vmatpush1.bf16.msra.mxu0 0
    %1826 = vmatprep.subr.bf16.mxu0 0
    %1827 = vmatpush1.bf16.msra.mxu0 0
    %1828 = vmatprep.subr.bf16.mxu0 0
    %1829 = vmatpush1.bf16.msra.mxu0 0
    %1830 = vmatprep.subr.bf16.mxu0 0
    %1831 = vmatpush1.bf16.msra.mxu0 0
    %1832 = vmatprep.subr.bf16.mxu0 0
    %1833 = vmatpush1.bf16.msra.mxu0 %v450
    %1834 = vmatprep.subr.bf16.mxu0 0
    %1835 = vmatpush1.bf16.msra.mxu0 %v449
    %1836 = vmatprep.subr.bf16.mxu0 0
    %1837 = vmatpush2.bf16.msra.mxu0 0
    %1838 = vmatprep.subr.bf16.mxu0 0
    %1839 = vmatpush2.bf16.msra.mxu0 0
    %1840 = vmatprep.subr.bf16.mxu0 0
    %1841 = vmatpush2.bf16.msra.mxu0 0
    %1842 = vmatprep.subr.bf16.mxu0 0
    %1843 = vmatpush2.bf16.msra.mxu0 0
    %1844 = vmatprep.subr.bf16.mxu0 0
    %1845 = vmatpush2.bf16.msra.mxu0 0
    %1846 = vmatprep.subr.bf16.mxu0 0
    %1847 = vmatpush2.bf16.msra.mxu0 0
    %1848 = vmatprep.subr.bf16.mxu0 0
    %1849 = vmatpush2.bf16.msra.mxu0 0
    %1850 = vmatprep.subr.bf16.mxu0 0
    %1851 = vmatpush2.bf16.msra.mxu0 0
    %1852 = vmatprep.mubr.bf16.mxu0 0
    %1853 = vmatmul.mubr.bf16.gmra.mxu0 %v1818
    %v1854 = vpop.f32.mrf.mxu0
    %v1855 = vadd.f32 0.0, %v1854
    %v1856 = vpop.f32.mrf.mxu0
    %v1857 = vpop.f32.mrf.mxu0
    %v1858 = vpop.f32.mrf.mxu0
    %1859 = vdwg.mxu0
    %v1860 = vadd.f32 %v1809, %v1855
    %v1861 = vxor.u32 %v1860, 2147483648
    %v1862 = vmul.f32 %v1861, 1.442695
    %v1863 = vpow.pop %v1862
    %v1864 = vadd.f32 %v1863, 1.0
    %v1865 = vrcp.pop %v1864
    %v1866 = vmul.f32 1.0, %v1865
    %v1867 = vtanh.pop %v1860
    %v1868 = vmul.f32 %v1866, %v1650
    %1870 = vrot.lane.b32.xlu0 %v1867, 32
    %v1871 = vpop.permute.xlu0 %1870
    %v1873 = vmul.f32 %v1866, %v1871
    %1875 = vrot.lane.b32.xlu0 %v1873, 32
    %v1876 = vpop.permute.xlu0 %1875
    %v1878 = vadd.f32 %v1868, %v1876
    %v1879 = vtanh.pop %v1878
    %1881 = vrot.lane.b32.xlu0 %v1879, 32
    %v1882 = vpop.permute.xlu0 %1881
    %v1884 = vmul.f32 %v1866, %v1882
    %v1885 = vpack.c.bf16 %v1884, %v1884
    %v1888 = vunpack.c.l.b16 %v1772
    %v1889 = vunpack.c.l.b16 %v1773
    %v1890 = vrot.slane %v1888, 7
    %v1891 = vrot.slane %v1889, 6
    %v1892 = vsel %vm273, %v1891, %v1890
    %v1893 = vpack.c.b16 %v1892, %v1892
    %1894 = vrot.lane.b32.xlu0 %v1893, 64
    %v1895 = vpop.permute.xlu0 %1894
    %v1897 = vsel %vm168, %v1895, 0
    %1899 = vmatprep.subr.bf16.mxu0 0
    %1900 = vmatpush1.bf16.msra.mxu0 0
    %1901 = vmatprep.subr.bf16.mxu0 0
    %1902 = vmatpush1.bf16.msra.mxu0 0
    %1903 = vmatprep.subr.bf16.mxu0 0
    %1904 = vmatpush1.bf16.msra.mxu0 0
    %1905 = vmatprep.subr.bf16.mxu0 0
    %1906 = vmatpush1.bf16.msra.mxu0 0
    %1907 = vmatprep.subr.bf16.mxu0 0
    %1908 = vmatpush1.bf16.msra.mxu0 0
    %1909 = vmatprep.subr.bf16.mxu0 0
    %1910 = vmatpush1.bf16.msra.mxu0 0
    %1911 = vmatprep.subr.bf16.mxu0 0
    %1912 = vmatpush1.bf16.msra.mxu0 %v398
    %1913 = vmatprep.subr.bf16.mxu0 0
    %1914 = vmatpush1.bf16.msra.mxu0 %v397
    %1915 = vmatprep.subr.bf16.mxu0 0
    %1916 = vmatpush2.bf16.msra.mxu0 0
    %1917 = vmatprep.subr.bf16.mxu0 0
    %1918 = vmatpush2.bf16.msra.mxu0 0
    %1919 = vmatprep.subr.bf16.mxu0 0
    %1920 = vmatpush2.bf16.msra.mxu0 0
    %1921 = vmatprep.subr.bf16.mxu0 0
    %1922 = vmatpush2.bf16.msra.mxu0 0
    %1923 = vmatprep.subr.bf16.mxu0 0
    %1924 = vmatpush2.bf16.msra.mxu0 0
    %1925 = vmatprep.subr.bf16.mxu0 0
    %1926 = vmatpush2.bf16.msra.mxu0 0
    %1927 = vmatprep.subr.bf16.mxu0 0
    %1928 = vmatpush2.bf16.msra.mxu0 0
    %1929 = vmatprep.subr.bf16.mxu0 0
    %1930 = vmatpush2.bf16.msra.mxu0 0
    %1931 = vmatprep.mubr.bf16.mxu0 0
    %1932 = vmatmul.mubr.bf16.gmra.mxu0 %v1897
    %v1933 = vpop.f32.mrf.mxu0
    %v1934 = vadd.f32 %v387, %v1933
    %v1935 = vpop.f32.mrf.mxu0
    %v1936 = vpop.f32.mrf.mxu0
    %v1937 = vpop.f32.mrf.mxu0
    %1938 = vdwg.mxu0
    %1940 = vrot.lane.b32.xlu0 %v1885, 64
    %v1941 = vpop.permute.xlu0 %1940
    %v1943 = vsel %vm168, %v1941, 0
    %1945 = vmatprep.subr.bf16.mxu0 0
    %1946 = vmatpush1.bf16.msra.mxu0 0
    %1947 = vmatprep.subr.bf16.mxu0 0
    %1948 = vmatpush1.bf16.msra.mxu0 0
    %1949 = vmatprep.subr.bf16.mxu0 0
    %1950 = vmatpush1.bf16.msra.mxu0 0
    %1951 = vmatprep.subr.bf16.mxu0 0
    %1952 = vmatpush1.bf16.msra.mxu0 0
    %1953 = vmatprep.subr.bf16.mxu0 0
    %1954 = vmatpush1.bf16.msra.mxu0 0
    %1955 = vmatprep.subr.bf16.mxu0 0
    %1956 = vmatpush1.bf16.msra.mxu0 0
    %1957 = vmatprep.subr.bf16.mxu0 0
    %1958 = vmatpush1.bf16.msra.mxu0 %v450
    %1959 = vmatprep.subr.bf16.mxu0 0
    %1960 = vmatpush1.bf16.msra.mxu0 %v449
    %1961 = vmatprep.subr.bf16.mxu0 0
    %1962 = vmatpush2.bf16.msra.mxu0 0
    %1963 = vmatprep.subr.bf16.mxu0 0
    %1964 = vmatpush2.bf16.msra.mxu0 0
    %1965 = vmatprep.subr.bf16.mxu0 0
    %1966 = vmatpush2.bf16.msra.mxu0 0
    %1967 = vmatprep.subr.bf16.mxu0 0
    %1968 = vmatpush2.bf16.msra.mxu0 0
    %1969 = vmatprep.subr.bf16.mxu0 0
    %1970 = vmatpush2.bf16.msra.mxu0 0
    %1971 = vmatprep.subr.bf16.mxu0 0
    %1972 = vmatpush2.bf16.msra.mxu0 0
    %1973 = vmatprep.subr.bf16.mxu0 0
    %1974 = vmatpush2.bf16.msra.mxu0 0
    %1975 = vmatprep.subr.bf16.mxu0 0
    %1976 = vmatpush2.bf16.msra.mxu0 0
    %1977 = vmatprep.mubr.bf16.mxu0 0
    %1978 = vmatmul.mubr.bf16.gmra.mxu0 %v1943
    %v1979 = vpop.f32.mrf.mxu0
    %v1980 = vadd.f32 0.0, %v1979
    %v1981 = vpop.f32.mrf.mxu0
    %v1982 = vpop.f32.mrf.mxu0
    %v1983 = vpop.f32.mrf.mxu0
    %1984 = vdwg.mxu0
    %v1985 = vadd.f32 %v1934, %v1980
    %v1986 = vxor.u32 %v1985, 2147483648
    %v1987 = vmul.f32 %v1986, 1.442695
    %v1988 = vpow.pop %v1987
    %v1989 = vadd.f32 %v1988, 1.0
    %v1990 = vrcp.pop %v1989
    %v1991 = vmul.f32 1.0, %v1990
    %v1992 = vtanh.pop %v1985
    %v1993 = vmul.f32 %v1991, %v1878
    %1995 = vrot.lane.b32.xlu0 %v1992, 32
    %v1996 = vpop.permute.xlu0 %1995
    %v1998 = vmul.f32 %v1991, %v1996
    %2000 = vrot.lane.b32.xlu0 %v1998, 32
    %v2001 = vpop.permute.xlu0 %2000
    %v2003 = vadd.f32 %v1993, %v2001
    %v2004 = vtanh.pop %v2003
    %2006 = vrot.lane.b32.xlu0 %v2004, 32
    %v2007 = vpop.permute.xlu0 %2006
    %v2009 = vmul.f32 %v1991, %v2007
    %v2010 = vpack.c.bf16 %v2009, %v2009
    %v2011 = vld [vmem:[%s7] sm:$0xf]
    %v2012 = vld [vmem:[%s7 + $0x4] sm:$0xf]
    %v2013 = vld [vmem:[%s7 + $0x8] sm:$0xf]
    %v2014 = vld [vmem:[%s7 + $0xc] sm:$0xf]
    %v2015 = vld [vmem:[#allocation8] sm:$0x1]
    %v2017 = vlaneseq
    %v2018 = vshrl.u32 %v2017, 7
    %v2019 = vsub.s32 0, %v2018
    %v2020 = vrot.slane %v2015, %v2019
    %2023 = vrot.lane.b32.xlu0 %v2010, 64
    %v2024 = vpop.permute.xlu0 %2023
    %v2029 = vunpack.c.l.b16 %v2011
    %v2030 = vunpack.c.l.b16 %v2012
    %v2031 = vunpack.c.l.b16 %v2013
    %v2032 = vunpack.c.l.b16 %v2014
    %v2033 = vpack.c.b16 %v2030, %v2029
    %v2034 = vpack.c.b16 %v2032, %v2031
    %v2038 = vsel %vm168, %v2024, 0
    %2040 = vmatprep.subr.bf16.mxu0 0
    %2041 = vmatpush1.bf16.msra.mxu0 0
    %2042 = vmatprep.subr.bf16.mxu0 0
    %2043 = vmatpush1.bf16.msra.mxu0 0
    %2044 = vmatprep.subr.bf16.mxu0 0
    %2045 = vmatpush1.bf16.msra.mxu0 0
    %2046 = vmatprep.subr.bf16.mxu0 0
    %2047 = vmatpush1.bf16.msra.mxu0 0
    %2048 = vmatprep.subr.bf16.mxu0 0
    %2049 = vmatpush1.bf16.msra.mxu0 0
    %2050 = vmatprep.subr.bf16.mxu0 0
    %2051 = vmatpush1.bf16.msra.mxu0 0
    %2052 = vmatprep.subr.bf16.mxu0 0
    %2053 = vmatpush1.bf16.msra.mxu0 %v2034
    %2054 = vmatprep.subr.bf16.mxu0 0
    %2055 = vmatpush1.bf16.msra.mxu0 %v2033
    %2056 = vmatprep.subr.bf16.mxu0 0
    %2057 = vmatpush2.bf16.msra.mxu0 0
    %2058 = vmatprep.subr.bf16.mxu0 0
    %2059 = vmatpush2.bf16.msra.mxu0 0
    %2060 = vmatprep.subr.bf16.mxu0 0
    %2061 = vmatpush2.bf16.msra.mxu0 0
    %2062 = vmatprep.subr.bf16.mxu0 0
    %2063 = vmatpush2.bf16.msra.mxu0 0
    %2064 = vmatprep.subr.bf16.mxu0 0
    %2065 = vmatpush2.bf16.msra.mxu0 0
    %2066 = vmatprep.subr.bf16.mxu0 0
    %2067 = vmatpush2.bf16.msra.mxu0 0
    %2068 = vmatprep.subr.bf16.mxu0 0
    %2069 = vmatpush2.bf16.msra.mxu0 0
    %2070 = vmatprep.subr.bf16.mxu0 0
    %2071 = vmatpush2.bf16.msra.mxu0 0
    %2072 = vmatprep.mubr.bf16.mxu0 0
    %2073 = vmatmul.mubr.bf16.gmra.mxu0 %v2038
    %v2074 = vpop.f32.mrf.mxu0
    %v2075 = vadd.f32 %v2020, %v2074
    %v2076 = vpop.f32.mrf.mxu0
    %v2077 = vpop.f32.mrf.mxu0
    %v2078 = vpop.f32.mrf.mxu0
    %2079 = vdwg.mxu0
    %vm2080 = vcmask 58368
    %2081 = vst.msk [vmem:[#allocation10] sm:$0x3] %vm2080, %v2075
    // Predicated region
    $region54: #{lstm_fc_forward.1} parent=1 // pred_check
      _
    $region55: #{lstm_fc_forward.1} parent=1 // pred_check_branch
      %2083 = sbr.rel (0) target = $region57
    $region56: #{lstm_fc_forward.1} parent=1 // pred_region
      %s2085 = ssub.s32 32, 32
      %2086 = vsyncadd [#allocation4], %s2085
      %s2088 = sshll.u32 [#allocation10], 4
      %s2089 = int_to_ptr.vmem [resolvable:$true] %s2088
      %2091 = dma.vmem_to_hbm [thread:$0]  %s2089, 32, %s9, [#allocation4]
    $region57: #{lstm_fc_forward.1} parent=1 // pred_fallthru
      _
    // Predicated region
    $region58: #{lstm_fc_forward.1} parent=1 // pred_check
      _
    $region59: #{lstm_fc_forward.1} parent=1 // pred_check_branch
      %2093 = sbr.rel (0) target = $region61
    $region60: #{lstm_fc_forward.1} parent=1 // pred_region
      %2094 = dma.done [#allocation4], 32
    $region61: #{lstm_fc_forward.1} parent=1 // pred_fallthru
      _
    %2095 = vsyncpa [#allocation3], 1
    %2096 = vsyncpa [#allocation6], 1
    %2097 = vsyncpa [#allocation9], 1
    %2098 = vsyncpa [#allocation4], 1

</llo_original>
